<compile_context>
chip_gen: v7x
topology: tpu7x:2x2x1
jax: 0.10.0
libtpu: 0.0.40
codegen_flags: <defaults>
</compile_context>

<pallas_src>
import numpy as np

import jax
import jax.numpy as jnp
from jax import lax
from jax.experimental import pallas as pl
from jax.experimental.pallas import tpu as pltpu


def _make_spatial_attention_kernel(bt, C, H, W, K):
    pad = K // 2
    HP, WP = H + 2 * pad, W + 2 * pad
    inv_c = 1.0 / float(C)
    n_taps = 2 * K * K

    def kernel(x_ref, w_ref, o_ref, plane_ref):
        # x_ref:     (bt, C, H, W)   VMEM  unpadded input block (x.dtype)
        # w_ref:     (2*K*K,)        SMEM  conv1 weight, [cin, kh, kw] order, f32
        # o_ref:     (bt, 1, H, W)   VMEM  output block (x.dtype)
        # plane_ref: (2, HP, WP)     VMEM  f32 scratch: padded [mean_C, max_C]

        # Zero the plane scratch (scratch is uninitialized / persists across
        # grid steps; only the interior is overwritten below, the halo must be
        # zero to reproduce PyTorch's zero padding of the [mean, max] map).
        plane_ref[...] = jnp.zeros_like(plane_ref)

        # Hoist the 98 scalar weights out of the per-item loop (one SMEM read
        # each per grid step).
        wv = [w_ref[t] for t in range(n_taps)]

        for b in range(bt):  # static loop over batch items in this block
            # ---- channel mean & max, streamed (carry = 2 small planes) ----
            x0 = x_ref[b, 0].astype(jnp.float32)

            def chan_body(c, carry):
                s, m = carry
                xc = x_ref[b, c].astype(jnp.float32)
                return s + xc, jnp.maximum(m, xc)

            if C > 1:
                unroll = True if C <= 16 else 4
                acc_sum, acc_max = lax.fori_loop(
                    1, C, chan_body, (x0, x0), unroll=unroll)
            else:
                acc_sum, acc_max = x0, x0

            # Write the reduced planes into the interior of the padded scratch.
            plane_ref[0, pad:pad + H, pad:pad + W] = acc_sum * inv_c
            plane_ref[1, pad:pad + H, pad:pad + W] = acc_max

            # ---- 7x7 conv (2 -> 1 channels, no bias) as a VPU stencil ----
            # 14 row-slab loads; the 7 column taps are value slices of the slab.
            conv = jnp.zeros((H, W), jnp.float32)
            for ci in range(2):
                base = ci * K * K
                for i in range(K):
                    slab = plane_ref[ci, i:i + H, :]  # (H, WP), one VMEM load
                    for j in range(K):
                        conv = conv + wv[base + i * K + j] * slab[:, j:j + W]

            o_ref[b, 0] = jax.nn.sigmoid(conv).astype(o_ref.dtype)

    return kernel


def spatial_attention(x, conv1_weight):
    """SpatialAttention forward.

    x:            (B, C, H, W)  float32 or bfloat16
    conv1_weight: (1, 2, K, K)  (PyTorch OIHW layout, bias=False)
    returns:      (B, 1, H, W) x.dtype = sigmoid(conv7x7(cat([mean_C(x), max_C(x)])))
    """
    B, C, H, W = x.shape
    K = conv1_weight.shape[-1]
    pad = K // 2
    HP, WP = H + 2 * pad, W + 2 * pad

    w_flat = conv1_weight.astype(jnp.float32).reshape(2 * K * K)

    # ---- batch items per grid step: amortize the ~0.35 us per-step overhead ----
    per_item_bytes = C * H * W * x.dtype.itemsize
    target_bytes = 2 << 20  # ~2 MiB of x per step (double-buffered -> ~4 MiB VMEM)
    bt = max(1, min(16, B, target_bytes // max(per_item_bytes, 1)))
    # Keep >= 2 grid steps when possible so v7x's two TensorCores both get work.
    if B >= 2 and pl.cdiv(B, bt) < 2:
        bt = pl.cdiv(B, 2)
    grid = (pl.cdiv(B, bt),)

    kernel = _make_spatial_attention_kernel(bt, C, H, W, K)

    cost = pl.CostEstimate(
        flops=int(B * (2 * C * H * W + 4 * K * K * H * W)),
        transcendentals=int(B * H * W),  # sigmoid
        bytes_accessed=int(x.size * x.dtype.itemsize
                           + w_flat.size * 4
                           + B * H * W * x.dtype.itemsize),
    )

    return pl.pallas_call(
        kernel,
        out_shape=jax.ShapeDtypeStruct((B, 1, H, W), x.dtype),
        grid=grid,
        in_specs=[
            pl.BlockSpec((bt, C, H, W), lambda i: (i, 0, 0, 0)),
            pl.BlockSpec(memory_space=pltpu.MemorySpace.SMEM),
        ],
        out_specs=pl.BlockSpec((bt, 1, H, W), lambda i: (i, 0, 0, 0)),
        scratch_shapes=[pltpu.VMEM((2, HP, WP), jnp.float32)],
        compiler_params=pltpu.CompilerParams(
            dimension_semantics=("parallel",),
            vmem_limit_bytes=32 * 1024 * 1024,
        ),
        cost_estimate=cost,
    )(x, w_flat)


if __name__ == "__main__":
    B, C, H, W, K = 2, 4, 16, 16, 7

    key = jax.random.PRNGKey(0)
    kx, kw = jax.random.split(key)
    x = jax.random.normal(kx, (B, C, H, W), jnp.float32)
    # PyTorch Conv2d default init: U(-b, b), b = 1/sqrt(fan_in), fan_in = 2*K*K.
    bound = 1.0 / float(np.sqrt(2 * K * K))
    w = jax.random.uniform(kw, (1, 2, K, K), jnp.float32, -bound, bound)

    out = jax.jit(spatial_attention)(x, w)
    out = jax.block_until_ready(out)

    # Host-side float32 reference (independent implementation of the same math).
    xn = np.asarray(x)
    wn = np.asarray(w)
    cat = np.stack([xn.mean(axis=1), xn.max(axis=1)], axis=1)  # (B, 2, H, W)
    catp = np.pad(cat, ((0, 0), (0, 0), (K // 2, K // 2), (K // 2, K // 2)))
    ref = np.zeros((B, 1, H, W), np.float32)
    for c in range(2):
        for i in range(K):
            for j in range(K):
                ref[:, 0] += wn[0, c, i, j] * catp[:, c, i:i + H, j:j + W]
    ref = 1.0 / (1.0 + np.exp(-ref))

    out_np = np.asarray(out)
    assert out_np.shape == (B, 1, H, W)
    assert np.isfinite(out_np).all()
    np.testing.assert_allclose(out_np, ref, rtol=1e-4, atol=1e-5)
    print("KERNEL_OK")
</pallas_src>

<mosaic_0001>
module attributes {stable_mosaic.version = 11 : i64} {
  func.func @kernel(%arg0: i32, %arg1: memref<1x4x16x16xf32, #tpu.memory_space<vmem>>, %arg2: memref<98xf32, #tpu.memory_space<smem>>, %arg3: memref<1x1x16x16xf32, #tpu.memory_space<vmem>>, %arg4: memref<2x22x22xf32, #tpu.memory_space<vmem>>) attributes {dimension_semantics = [#tpu.dimension_semantics<parallel>], iteration_bounds = array<i64: 2>, scalar_prefetch = 0 : i64, scratch_operands = 1 : i64, tpu.core_type = #tpu.core_type<tc>, window_params = [{transform_indices = @transform_0, window_bounds = array<i64: 1, 4, 16, 16>}, {transform_indices = @transform_1, window_bounds = array<i64: 98>}, {transform_indices = @transform_2, window_bounds = array<i64: 1, 1, 16, 16>}]} {
    %cst = arith.constant 0.000000e+00 : f32
    %0 = vector.broadcast %cst : f32 to vector<2x22x22xf32>
    %c0 = arith.constant 0 : index
    %c0_0 = arith.constant 0 : index
    %c0_1 = arith.constant 0 : index
    %1 = vector.load %arg4[%c0, %c0_0, %c0_1] : memref<2x22x22xf32, #tpu.memory_space<vmem>>, vector<2x22x22xf32>
    tpu.vector_store %arg4[%c0, %c0_0, %c0_1], %0 {strides = array<i32>} : memref<2x22x22xf32, #tpu.memory_space<vmem>>, vector<2x22x22xf32>,
    %c0_2 = arith.constant 0 : index
    %2 = memref.load %arg2[%c0_2] : memref<98xf32, #tpu.memory_space<smem>>
    %c1 = arith.constant 1 : index
    %3 = memref.load %arg2[%c1] : memref<98xf32, #tpu.memory_space<smem>>
    %c2 = arith.constant 2 : index
    %4 = memref.load %arg2[%c2] : memref<98xf32, #tpu.memory_space<smem>>
    %c3 = arith.constant 3 : index
    %5 = memref.load %arg2[%c3] : memref<98xf32, #tpu.memory_space<smem>>
    %c4 = arith.constant 4 : index
    %6 = memref.load %arg2[%c4] : memref<98xf32, #tpu.memory_space<smem>>
    %c5 = arith.constant 5 : index
    %7 = memref.load %arg2[%c5] : memref<98xf32, #tpu.memory_space<smem>>
    %c6 = arith.constant 6 : index
    %8 = memref.load %arg2[%c6] : memref<98xf32, #tpu.memory_space<smem>>
    %c7 = arith.constant 7 : index
    %9 = memref.load %arg2[%c7] : memref<98xf32, #tpu.memory_space<smem>>
    %c8 = arith.constant 8 : index
    %10 = memref.load %arg2[%c8] : memref<98xf32, #tpu.memory_space<smem>>
    %c9 = arith.constant 9 : index
    %11 = memref.load %arg2[%c9] : memref<98xf32, #tpu.memory_space<smem>>
    %c10 = arith.constant 10 : index
    %12 = memref.load %arg2[%c10] : memref<98xf32, #tpu.memory_space<smem>>
    %c11 = arith.constant 11 : index
    %13 = memref.load %arg2[%c11] : memref<98xf32, #tpu.memory_space<smem>>
    %c12 = arith.constant 12 : index
    %14 = memref.load %arg2[%c12] : memref<98xf32, #tpu.memory_space<smem>>
    %c13 = arith.constant 13 : index
    %15 = memref.load %arg2[%c13] : memref<98xf32, #tpu.memory_space<smem>>
    %c14 = arith.constant 14 : index
    %16 = memref.load %arg2[%c14] : memref<98xf32, #tpu.memory_space<smem>>
    %c15 = arith.constant 15 : index
    %17 = memref.load %arg2[%c15] : memref<98xf32, #tpu.memory_space<smem>>
    %c16 = arith.constant 16 : index
    %18 = memref.load %arg2[%c16] : memref<98xf32, #tpu.memory_space<smem>>
    %c17 = arith.constant 17 : index
    %19 = memref.load %arg2[%c17] : memref<98xf32, #tpu.memory_space<smem>>
    %c18 = arith.constant 18 : index
    %20 = memref.load %arg2[%c18] : memref<98xf32, #tpu.memory_space<smem>>
    %c19 = arith.constant 19 : index
    %21 = memref.load %arg2[%c19] : memref<98xf32, #tpu.memory_space<smem>>
    %c20 = arith.constant 20 : index
    %22 = memref.load %arg2[%c20] : memref<98xf32, #tpu.memory_space<smem>>
    %c21 = arith.constant 21 : index
    %23 = memref.load %arg2[%c21] : memref<98xf32, #tpu.memory_space<smem>>
    %c22 = arith.constant 22 : index
    %24 = memref.load %arg2[%c22] : memref<98xf32, #tpu.memory_space<smem>>
    %c23 = arith.constant 23 : index
    %25 = memref.load %arg2[%c23] : memref<98xf32, #tpu.memory_space<smem>>
    %c24 = arith.constant 24 : index
    %26 = memref.load %arg2[%c24] : memref<98xf32, #tpu.memory_space<smem>>
    %c25 = arith.constant 25 : index
    %27 = memref.load %arg2[%c25] : memref<98xf32, #tpu.memory_space<smem>>
    %c26 = arith.constant 26 : index
    %28 = memref.load %arg2[%c26] : memref<98xf32, #tpu.memory_space<smem>>
    %c27 = arith.constant 27 : index
    %29 = memref.load %arg2[%c27] : memref<98xf32, #tpu.memory_space<smem>>
    %c28 = arith.constant 28 : index
    %30 = memref.load %arg2[%c28] : memref<98xf32, #tpu.memory_space<smem>>
    %c29 = arith.constant 29 : index
    %31 = memref.load %arg2[%c29] : memref<98xf32, #tpu.memory_space<smem>>
    %c30 = arith.constant 30 : index
    %32 = memref.load %arg2[%c30] : memref<98xf32, #tpu.memory_space<smem>>
    %c31 = arith.constant 31 : index
    %33 = memref.load %arg2[%c31] : memref<98xf32, #tpu.memory_space<smem>>
    %c32 = arith.constant 32 : index
    %34 = memref.load %arg2[%c32] : memref<98xf32, #tpu.memory_space<smem>>
    %c33 = arith.constant 33 : index
    %35 = memref.load %arg2[%c33] : memref<98xf32, #tpu.memory_space<smem>>
    %c34 = arith.constant 34 : index
    %36 = memref.load %arg2[%c34] : memref<98xf32, #tpu.memory_space<smem>>
    %c35 = arith.constant 35 : index
    %37 = memref.load %arg2[%c35] : memref<98xf32, #tpu.memory_space<smem>>
    %c36 = arith.constant 36 : index
    %38 = memref.load %arg2[%c36] : memref<98xf32, #tpu.memory_space<smem>>
    %c37 = arith.constant 37 : index
    %39 = memref.load %arg2[%c37] : memref<98xf32, #tpu.memory_space<smem>>
    %c38 = arith.constant 38 : index
    %40 = memref.load %arg2[%c38] : memref<98xf32, #tpu.memory_space<smem>>
    %c39 = arith.constant 39 : index
    %41 = memref.load %arg2[%c39] : memref<98xf32, #tpu.memory_space<smem>>
    %c40 = arith.constant 40 : index
    %42 = memref.load %arg2[%c40] : memref<98xf32, #tpu.memory_space<smem>>
    %c41 = arith.constant 41 : index
    %43 = memref.load %arg2[%c41] : memref<98xf32, #tpu.memory_space<smem>>
    %c42 = arith.constant 42 : index
    %44 = memref.load %arg2[%c42] : memref<98xf32, #tpu.memory_space<smem>>
    %c43 = arith.constant 43 : index
    %45 = memref.load %arg2[%c43] : memref<98xf32, #tpu.memory_space<smem>>
    %c44 = arith.constant 44 : index
    %46 = memref.load %arg2[%c44] : memref<98xf32, #tpu.memory_space<smem>>
    %c45 = arith.constant 45 : index
    %47 = memref.load %arg2[%c45] : memref<98xf32, #tpu.memory_space<smem>>
    %c46 = arith.constant 46 : index
    %48 = memref.load %arg2[%c46] : memref<98xf32, #tpu.memory_space<smem>>
    %c47 = arith.constant 47 : index
    %49 = memref.load %arg2[%c47] : memref<98xf32, #tpu.memory_space<smem>>
    %c48 = arith.constant 48 : index
    %50 = memref.load %arg2[%c48] : memref<98xf32, #tpu.memory_space<smem>>
    %c49 = arith.constant 49 : index
    %51 = memref.load %arg2[%c49] : memref<98xf32, #tpu.memory_space<smem>>
    %c50 = arith.constant 50 : index
    %52 = memref.load %arg2[%c50] : memref<98xf32, #tpu.memory_space<smem>>
    %c51 = arith.constant 51 : index
    %53 = memref.load %arg2[%c51] : memref<98xf32, #tpu.memory_space<smem>>
    %c52 = arith.constant 52 : index
    %54 = memref.load %arg2[%c52] : memref<98xf32, #tpu.memory_space<smem>>
    %c53 = arith.constant 53 : index
    %55 = memref.load %arg2[%c53] : memref<98xf32, #tpu.memory_space<smem>>
    %c54 = arith.constant 54 : index
    %56 = memref.load %arg2[%c54] : memref<98xf32, #tpu.memory_space<smem>>
    %c55 = arith.constant 55 : index
    %57 = memref.load %arg2[%c55] : memref<98xf32, #tpu.memory_space<smem>>
    %c56 = arith.constant 56 : index
    %58 = memref.load %arg2[%c56] : memref<98xf32, #tpu.memory_space<smem>>
    %c57 = arith.constant 57 : index
    %59 = memref.load %arg2[%c57] : memref<98xf32, #tpu.memory_space<smem>>
    %c58 = arith.constant 58 : index
    %60 = memref.load %arg2[%c58] : memref<98xf32, #tpu.memory_space<smem>>
    %c59 = arith.constant 59 : index
    %61 = memref.load %arg2[%c59] : memref<98xf32, #tpu.memory_space<smem>>
    %c60 = arith.constant 60 : index
    %62 = memref.load %arg2[%c60] : memref<98xf32, #tpu.memory_space<smem>>
    %c61 = arith.constant 61 : index
    %63 = memref.load %arg2[%c61] : memref<98xf32, #tpu.memory_space<smem>>
    %c62 = arith.constant 62 : index
    %64 = memref.load %arg2[%c62] : memref<98xf32, #tpu.memory_space<smem>>
    %c63 = arith.constant 63 : index
    %65 = memref.load %arg2[%c63] : memref<98xf32, #tpu.memory_space<smem>>
    %c64 = arith.constant 64 : index
    %66 = memref.load %arg2[%c64] : memref<98xf32, #tpu.memory_space<smem>>
    %c65 = arith.constant 65 : index
    %67 = memref.load %arg2[%c65] : memref<98xf32, #tpu.memory_space<smem>>
    %c66 = arith.constant 66 : index
    %68 = memref.load %arg2[%c66] : memref<98xf32, #tpu.memory_space<smem>>
    %c67 = arith.constant 67 : index
    %69 = memref.load %arg2[%c67] : memref<98xf32, #tpu.memory_space<smem>>
    %c68 = arith.constant 68 : index
    %70 = memref.load %arg2[%c68] : memref<98xf32, #tpu.memory_space<smem>>
    %c69 = arith.constant 69 : index
    %71 = memref.load %arg2[%c69] : memref<98xf32, #tpu.memory_space<smem>>
    %c70 = arith.constant 70 : index
    %72 = memref.load %arg2[%c70] : memref<98xf32, #tpu.memory_space<smem>>
    %c71 = arith.constant 71 : index
    %73 = memref.load %arg2[%c71] : memref<98xf32, #tpu.memory_space<smem>>
    %c72 = arith.constant 72 : index
    %74 = memref.load %arg2[%c72] : memref<98xf32, #tpu.memory_space<smem>>
    %c73 = arith.constant 73 : index
    %75 = memref.load %arg2[%c73] : memref<98xf32, #tpu.memory_space<smem>>
    %c74 = arith.constant 74 : index
    %76 = memref.load %arg2[%c74] : memref<98xf32, #tpu.memory_space<smem>>
    %c75 = arith.constant 75 : index
    %77 = memref.load %arg2[%c75] : memref<98xf32, #tpu.memory_space<smem>>
    %c76 = arith.constant 76 : index
    %78 = memref.load %arg2[%c76] : memref<98xf32, #tpu.memory_space<smem>>
    %c77 = arith.constant 77 : index
    %79 = memref.load %arg2[%c77] : memref<98xf32, #tpu.memory_space<smem>>
    %c78 = arith.constant 78 : index
    %80 = memref.load %arg2[%c78] : memref<98xf32, #tpu.memory_space<smem>>
    %c79 = arith.constant 79 : index
    %81 = memref.load %arg2[%c79] : memref<98xf32, #tpu.memory_space<smem>>
    %c80 = arith.constant 80 : index
    %82 = memref.load %arg2[%c80] : memref<98xf32, #tpu.memory_space<smem>>
    %c81 = arith.constant 81 : index
    %83 = memref.load %arg2[%c81] : memref<98xf32, #tpu.memory_space<smem>>
    %c82 = arith.constant 82 : index
    %84 = memref.load %arg2[%c82] : memref<98xf32, #tpu.memory_space<smem>>
    %c83 = arith.constant 83 : index
    %85 = memref.load %arg2[%c83] : memref<98xf32, #tpu.memory_space<smem>>
    %c84 = arith.constant 84 : index
    %86 = memref.load %arg2[%c84] : memref<98xf32, #tpu.memory_space<smem>>
    %c85 = arith.constant 85 : index
    %87 = memref.load %arg2[%c85] : memref<98xf32, #tpu.memory_space<smem>>
    %c86 = arith.constant 86 : index
    %88 = memref.load %arg2[%c86] : memref<98xf32, #tpu.memory_space<smem>>
    %c87 = arith.constant 87 : index
    %89 = memref.load %arg2[%c87] : memref<98xf32, #tpu.memory_space<smem>>
    %c88 = arith.constant 88 : index
    %90 = memref.load %arg2[%c88] : memref<98xf32, #tpu.memory_space<smem>>
    %c89 = arith.constant 89 : index
    %91 = memref.load %arg2[%c89] : memref<98xf32, #tpu.memory_space<smem>>
    %c90 = arith.constant 90 : index
    %92 = memref.load %arg2[%c90] : memref<98xf32, #tpu.memory_space<smem>>
    %c91 = arith.constant 91 : index
    %93 = memref.load %arg2[%c91] : memref<98xf32, #tpu.memory_space<smem>>
    %c92 = arith.constant 92 : index
    %94 = memref.load %arg2[%c92] : memref<98xf32, #tpu.memory_space<smem>>
    %c93 = arith.constant 93 : index
    %95 = memref.load %arg2[%c93] : memref<98xf32, #tpu.memory_space<smem>>
    %c94 = arith.constant 94 : index
    %96 = memref.load %arg2[%c94] : memref<98xf32, #tpu.memory_space<smem>>
    %c95 = arith.constant 95 : index
    %97 = memref.load %arg2[%c95] : memref<98xf32, #tpu.memory_space<smem>>
    %c96 = arith.constant 96 : index
    %98 = memref.load %arg2[%c96] : memref<98xf32, #tpu.memory_space<smem>>
    %c97 = arith.constant 97 : index
    %99 = memref.load %arg2[%c97] : memref<98xf32, #tpu.memory_space<smem>>
    %c0_3 = arith.constant 0 : index
    %c0_4 = arith.constant 0 : index
    %c0_5 = arith.constant 0 : index
    %c0_6 = arith.constant 0 : index
    %100 = vector.load %arg1[%c0_3, %c0_4, %c0_5, %c0_6] : memref<1x4x16x16xf32, #tpu.memory_space<vmem>>, vector<1x1x16x16xf32>
    %101 = vector.shape_cast %100 : vector<1x1x16x16xf32> to vector<16x16xf32>
    %c1_i32 = arith.constant 1 : i32
    %c0_7 = arith.constant 0 : index
    %102 = arith.index_cast %c1_i32 : i32 to index
    %c0_8 = arith.constant 0 : index
    %c0_9 = arith.constant 0 : index
    %103 = vector.load %arg1[%c0_7, %102, %c0_8, %c0_9] : memref<1x4x16x16xf32, #tpu.memory_space<vmem>>, vector<1x1x16x16xf32>
    %104 = vector.shape_cast %103 : vector<1x1x16x16xf32> to vector<16x16xf32>
    %105 = arith.addf %101, %104 : vector<16x16xf32>
    %106 = arith.maximumf %101, %104 : vector<16x16xf32>
    %c2_i32 = arith.constant 2 : i32
    %c0_10 = arith.constant 0 : index
    %107 = arith.index_cast %c2_i32 : i32 to index
    %c0_11 = arith.constant 0 : index
    %c0_12 = arith.constant 0 : index
    %108 = vector.load %arg1[%c0_10, %107, %c0_11, %c0_12] : memref<1x4x16x16xf32, #tpu.memory_space<vmem>>, vector<1x1x16x16xf32>
    %109 = vector.shape_cast %108 : vector<1x1x16x16xf32> to vector<16x16xf32>
    %110 = arith.addf %105, %109 : vector<16x16xf32>
    %111 = arith.maximumf %106, %109 : vector<16x16xf32>
    %c3_i32 = arith.constant 3 : i32
    %c0_13 = arith.constant 0 : index
    %112 = arith.index_cast %c3_i32 : i32 to index
    %c0_14 = arith.constant 0 : index
    %c0_15 = arith.constant 0 : index
    %113 = vector.load %arg1[%c0_13, %112, %c0_14, %c0_15] : memref<1x4x16x16xf32, #tpu.memory_space<vmem>>, vector<1x1x16x16xf32>
    %114 = vector.shape_cast %113 : vector<1x1x16x16xf32> to vector<16x16xf32>
    %115 = arith.addf %110, %114 : vector<16x16xf32>
    %116 = arith.maximumf %111, %114 : vector<16x16xf32>
    %c3_i32_16 = arith.constant 3 : i32
    %cst_17 = arith.constant 2.500000e-01 : f32
    %117 = vector.broadcast %cst_17 : f32 to vector<16x16xf32>
    %118 = arith.mulf %115, %117 : vector<16x16xf32>
    %c0_18 = arith.constant 0 : index
    %c3_19 = arith.constant 3 : index
    %c3_20 = arith.constant 3 : index
    %119 = vector.load %arg4[%c0_18, %c3_19, %c3_20] : memref<2x22x22xf32, #tpu.memory_space<vmem>>, vector<1x16x16xf32>
    %120 = vector.shape_cast %119 : vector<1x16x16xf32> to vector<16x16xf32>
    %121 = vector.shape_cast %118 : vector<16x16xf32> to vector<1x16x16xf32>
    tpu.vector_store %arg4[%c0_18, %c3_19, %c3_20], %121 {strides = array<i32>} : memref<2x22x22xf32, #tpu.memory_space<vmem>>, vector<1x16x16xf32>,
    %c1_21 = arith.constant 1 : index
    %c3_22 = arith.constant 3 : index
    %c3_23 = arith.constant 3 : index
    %122 = vector.load %arg4[%c1_21, %c3_22, %c3_23] : memref<2x22x22xf32, #tpu.memory_space<vmem>>, vector<1x16x16xf32>
    %123 = vector.shape_cast %122 : vector<1x16x16xf32> to vector<16x16xf32>
    %124 = vector.shape_cast %116 : vector<16x16xf32> to vector<1x16x16xf32>
    tpu.vector_store %arg4[%c1_21, %c3_22, %c3_23], %124 {strides = array<i32>} : memref<2x22x22xf32, #tpu.memory_space<vmem>>, vector<1x16x16xf32>,
    %cst_24 = arith.constant 0.000000e+00 : f32
    %125 = vector.broadcast %cst_24 : f32 to vector<16x16xf32>
    %c0_25 = arith.constant 0 : index
    %c0_26 = arith.constant 0 : index
    %c0_27 = arith.constant 0 : index
    %126 = vector.load %arg4[%c0_25, %c0_26, %c0_27] : memref<2x22x22xf32, #tpu.memory_space<vmem>>, vector<1x16x22xf32>
    %127 = vector.shape_cast %126 : vector<1x16x22xf32> to vector<16x22xf32>
    %128 = vector.extract_strided_slice %127 {offsets = [0, 0], sizes = [16, 16], strides = [1, 1]} : vector<16x22xf32> to vector<16x16xf32>
    %129 = vector.broadcast %2 : f32 to vector<16x16xf32>
    %130 = arith.mulf %129, %128 : vector<16x16xf32>
    %131 = arith.addf %125, %130 : vector<16x16xf32>
    %132 = vector.extract_strided_slice %127 {offsets = [0, 1], sizes = [16, 16], strides = [1, 1]} : vector<16x22xf32> to vector<16x16xf32>
    %133 = vector.broadcast %3 : f32 to vector<16x16xf32>
    %134 = arith.mulf %133, %132 : vector<16x16xf32>
    %135 = arith.addf %131, %134 : vector<16x16xf32>
    %136 = vector.extract_strided_slice %127 {offsets = [0, 2], sizes = [16, 16], strides = [1, 1]} : vector<16x22xf32> to vector<16x16xf32>
    %137 = vector.broadcast %4 : f32 to vector<16x16xf32>
    %138 = arith.mulf %137, %136 : vector<16x16xf32>
    %139 = arith.addf %135, %138 : vector<16x16xf32>
    %140 = vector.extract_strided_slice %127 {offsets = [0, 3], sizes = [16, 16], strides = [1, 1]} : vector<16x22xf32> to vector<16x16xf32>
    %141 = vector.broadcast %5 : f32 to vector<16x16xf32>
    %142 = arith.mulf %141, %140 : vector<16x16xf32>
    %143 = arith.addf %139, %142 : vector<16x16xf32>
    %144 = vector.extract_strided_slice %127 {offsets = [0, 4], sizes = [16, 16], strides = [1, 1]} : vector<16x22xf32> to vector<16x16xf32>
    %145 = vector.broadcast %6 : f32 to vector<16x16xf32>
    %146 = arith.mulf %145, %144 : vector<16x16xf32>
    %147 = arith.addf %143, %146 : vector<16x16xf32>
    %148 = vector.extract_strided_slice %127 {offsets = [0, 5], sizes = [16, 16], strides = [1, 1]} : vector<16x22xf32> to vector<16x16xf32>
    %149 = vector.broadcast %7 : f32 to vector<16x16xf32>
    %150 = arith.mulf %149, %148 : vector<16x16xf32>
    %151 = arith.addf %147, %150 : vector<16x16xf32>
    %152 = vector.extract_strided_slice %127 {offsets = [0, 6], sizes = [16, 16], strides = [1, 1]} : vector<16x22xf32> to vector<16x16xf32>
    %153 = vector.broadcast %8 : f32 to vector<16x16xf32>
    %154 = arith.mulf %153, %152 : vector<16x16xf32>
    %155 = arith.addf %151, %154 : vector<16x16xf32>
    %c0_28 = arith.constant 0 : index
    %c1_29 = arith.constant 1 : index
    %c0_30 = arith.constant 0 : index
    %156 = vector.load %arg4[%c0_28, %c1_29, %c0_30] : memref<2x22x22xf32, #tpu.memory_space<vmem>>, vector<1x16x22xf32>
    %157 = vector.shape_cast %156 : vector<1x16x22xf32> to vector<16x22xf32>
    %158 = vector.extract_strided_slice %157 {offsets = [0, 0], sizes = [16, 16], strides = [1, 1]} : vector<16x22xf32> to vector<16x16xf32>
    %159 = vector.broadcast %9 : f32 to vector<16x16xf32>
    %160 = arith.mulf %159, %158 : vector<16x16xf32>
    %161 = arith.addf %155, %160 : vector<16x16xf32>
    %162 = vector.extract_strided_slice %157 {offsets = [0, 1], sizes = [16, 16], strides = [1, 1]} : vector<16x22xf32> to vector<16x16xf32>
    %163 = vector.broadcast %10 : f32 to vector<16x16xf32>
    %164 = arith.mulf %163, %162 : vector<16x16xf32>
    %165 = arith.addf %161, %164 : vector<16x16xf32>
    %166 = vector.extract_strided_slice %157 {offsets = [0, 2], sizes = [16, 16], strides = [1, 1]} : vector<16x22xf32> to vector<16x16xf32>
    %167 = vector.broadcast %11 : f32 to vector<16x16xf32>
    %168 = arith.mulf %167, %166 : vector<16x16xf32>
    %169 = arith.addf %165, %168 : vector<16x16xf32>
    %170 = vector.extract_strided_slice %157 {offsets = [0, 3], sizes = [16, 16], strides = [1, 1]} : vector<16x22xf32> to vector<16x16xf32>
    %171 = vector.broadcast %12 : f32 to vector<16x16xf32>
    %172 = arith.mulf %171, %170 : vector<16x16xf32>
    %173 = arith.addf %169, %172 : vector<16x16xf32>
    %174 = vector.extract_strided_slice %157 {offsets = [0, 4], sizes = [16, 16], strides = [1, 1]} : vector<16x22xf32> to vector<16x16xf32>
    %175 = vector.broadcast %13 : f32 to vector<16x16xf32>
    %176 = arith.mulf %175, %174 : vector<16x16xf32>
    %177 = arith.addf %173, %176 : vector<16x16xf32>
    %178 = vector.extract_strided_slice %157 {offsets = [0, 5], sizes = [16, 16], strides = [1, 1]} : vector<16x22xf32> to vector<16x16xf32>
    %179 = vector.broadcast %14 : f32 to vector<16x16xf32>
    %180 = arith.mulf %179, %178 : vector<16x16xf32>
    %181 = arith.addf %177, %180 : vector<16x16xf32>
    %182 = vector.extract_strided_slice %157 {offsets = [0, 6], sizes = [16, 16], strides = [1, 1]} : vector<16x22xf32> to vector<16x16xf32>
    %183 = vector.broadcast %15 : f32 to vector<16x16xf32>
    %184 = arith.mulf %183, %182 : vector<16x16xf32>
    %185 = arith.addf %181, %184 : vector<16x16xf32>
    %c0_31 = arith.constant 0 : index
    %c2_32 = arith.constant 2 : index
    %c0_33 = arith.constant 0 : index
    %186 = vector.load %arg4[%c0_31, %c2_32, %c0_33] : memref<2x22x22xf32, #tpu.memory_space<vmem>>, vector<1x16x22xf32>
    %187 = vector.shape_cast %186 : vector<1x16x22xf32> to vector<16x22xf32>
    %188 = vector.extract_strided_slice %187 {offsets = [0, 0], sizes = [16, 16], strides = [1, 1]} : vector<16x22xf32> to vector<16x16xf32>
    %189 = vector.broadcast %16 : f32 to vector<16x16xf32>
    %190 = arith.mulf %189, %188 : vector<16x16xf32>
    %191 = arith.addf %185, %190 : vector<16x16xf32>
    %192 = vector.extract_strided_slice %187 {offsets = [0, 1], sizes = [16, 16], strides = [1, 1]} : vector<16x22xf32> to vector<16x16xf32>
    %193 = vector.broadcast %17 : f32 to vector<16x16xf32>
    %194 = arith.mulf %193, %192 : vector<16x16xf32>
    %195 = arith.addf %191, %194 : vector<16x16xf32>
    %196 = vector.extract_strided_slice %187 {offsets = [0, 2], sizes = [16, 16], strides = [1, 1]} : vector<16x22xf32> to vector<16x16xf32>
    %197 = vector.broadcast %18 : f32 to vector<16x16xf32>
    %198 = arith.mulf %197, %196 : vector<16x16xf32>
    %199 = arith.addf %195, %198 : vector<16x16xf32>
    %200 = vector.extract_strided_slice %187 {offsets = [0, 3], sizes = [16, 16], strides = [1, 1]} : vector<16x22xf32> to vector<16x16xf32>
    %201 = vector.broadcast %19 : f32 to vector<16x16xf32>
    %202 = arith.mulf %201, %200 : vector<16x16xf32>
    %203 = arith.addf %199, %202 : vector<16x16xf32>
    %204 = vector.extract_strided_slice %187 {offsets = [0, 4], sizes = [16, 16], strides = [1, 1]} : vector<16x22xf32> to vector<16x16xf32>
    %205 = vector.broadcast %20 : f32 to vector<16x16xf32>
    %206 = arith.mulf %205, %204 : vector<16x16xf32>
    %207 = arith.addf %203, %206 : vector<16x16xf32>
    %208 = vector.extract_strided_slice %187 {offsets = [0, 5], sizes = [16, 16], strides = [1, 1]} : vector<16x22xf32> to vector<16x16xf32>
    %209 = vector.broadcast %21 : f32 to vector<16x16xf32>
    %210 = arith.mulf %209, %208 : vector<16x16xf32>
    %211 = arith.addf %207, %210 : vector<16x16xf32>
    %212 = vector.extract_strided_slice %187 {offsets = [0, 6], sizes = [16, 16], strides = [1, 1]} : vector<16x22xf32> to vector<16x16xf32>
    %213 = vector.broadcast %22 : f32 to vector<16x16xf32>
    %214 = arith.mulf %213, %212 : vector<16x16xf32>
    %215 = arith.addf %211, %214 : vector<16x16xf32>
    %c0_34 = arith.constant 0 : index
    %c3_35 = arith.constant 3 : index
    %c0_36 = arith.constant 0 : index
    %216 = vector.load %arg4[%c0_34, %c3_35, %c0_36] : memref<2x22x22xf32, #tpu.memory_space<vmem>>, vector<1x16x22xf32>
    %217 = vector.shape_cast %216 : vector<1x16x22xf32> to vector<16x22xf32>
    %218 = vector.extract_strided_slice %217 {offsets = [0, 0], sizes = [16, 16], strides = [1, 1]} : vector<16x22xf32> to vector<16x16xf32>
    %219 = vector.broadcast %23 : f32 to vector<16x16xf32>
    %220 = arith.mulf %219, %218 : vector<16x16xf32>
    %221 = arith.addf %215, %220 : vector<16x16xf32>
    %222 = vector.extract_strided_slice %217 {offsets = [0, 1], sizes = [16, 16], strides = [1, 1]} : vector<16x22xf32> to vector<16x16xf32>
    %223 = vector.broadcast %24 : f32 to vector<16x16xf32>
    %224 = arith.mulf %223, %222 : vector<16x16xf32>
    %225 = arith.addf %221, %224 : vector<16x16xf32>
    %226 = vector.extract_strided_slice %217 {offsets = [0, 2], sizes = [16, 16], strides = [1, 1]} : vector<16x22xf32> to vector<16x16xf32>
    %227 = vector.broadcast %25 : f32 to vector<16x16xf32>
    %228 = arith.mulf %227, %226 : vector<16x16xf32>
    %229 = arith.addf %225, %228 : vector<16x16xf32>
    %230 = vector.extract_strided_slice %217 {offsets = [0, 3], sizes = [16, 16], strides = [1, 1]} : vector<16x22xf32> to vector<16x16xf32>
    %231 = vector.broadcast %26 : f32 to vector<16x16xf32>
    %232 = arith.mulf %231, %230 : vector<16x16xf32>
    %233 = arith.addf %229, %232 : vector<16x16xf32>
    %234 = vector.extract_strided_slice %217 {offsets = [0, 4], sizes = [16, 16], strides = [1, 1]} : vector<16x22xf32> to vector<16x16xf32>
    %235 = vector.broadcast %27 : f32 to vector<16x16xf32>
    %236 = arith.mulf %235, %234 : vector<16x16xf32>
    %237 = arith.addf %233, %236 : vector<16x16xf32>
    %238 = vector.extract_strided_slice %217 {offsets = [0, 5], sizes = [16, 16], strides = [1, 1]} : vector<16x22xf32> to vector<16x16xf32>
    %239 = vector.broadcast %28 : f32 to vector<16x16xf32>
    %240 = arith.mulf %239, %238 : vector<16x16xf32>
    %241 = arith.addf %237, %240 : vector<16x16xf32>
    %242 = vector.extract_strided_slice %217 {offsets = [0, 6], sizes = [16, 16], strides = [1, 1]} : vector<16x22xf32> to vector<16x16xf32>
    %243 = vector.broadcast %29 : f32 to vector<16x16xf32>
    %244 = arith.mulf %243, %242 : vector<16x16xf32>
    %245 = arith.addf %241, %244 : vector<16x16xf32>
    %c0_37 = arith.constant 0 : index
    %c4_38 = arith.constant 4 : index
    %c0_39 = arith.constant 0 : index
    %246 = vector.load %arg4[%c0_37, %c4_38, %c0_39] : memref<2x22x22xf32, #tpu.memory_space<vmem>>, vector<1x16x22xf32>
    %247 = vector.shape_cast %246 : vector<1x16x22xf32> to vector<16x22xf32>
    %248 = vector.extract_strided_slice %247 {offsets = [0, 0], sizes = [16, 16], strides = [1, 1]} : vector<16x22xf32> to vector<16x16xf32>
    %249 = vector.broadcast %30 : f32 to vector<16x16xf32>
    %250 = arith.mulf %249, %248 : vector<16x16xf32>
    %251 = arith.addf %245, %250 : vector<16x16xf32>
    %252 = vector.extract_strided_slice %247 {offsets = [0, 1], sizes = [16, 16], strides = [1, 1]} : vector<16x22xf32> to vector<16x16xf32>
    %253 = vector.broadcast %31 : f32 to vector<16x16xf32>
    %254 = arith.mulf %253, %252 : vector<16x16xf32>
    %255 = arith.addf %251, %254 : vector<16x16xf32>
    %256 = vector.extract_strided_slice %247 {offsets = [0, 2], sizes = [16, 16], strides = [1, 1]} : vector<16x22xf32> to vector<16x16xf32>
    %257 = vector.broadcast %32 : f32 to vector<16x16xf32>
    %258 = arith.mulf %257, %256 : vector<16x16xf32>
    %259 = arith.addf %255, %258 : vector<16x16xf32>
    %260 = vector.extract_strided_slice %247 {offsets = [0, 3], sizes = [16, 16], strides = [1, 1]} : vector<16x22xf32> to vector<16x16xf32>
    %261 = vector.broadcast %33 : f32 to vector<16x16xf32>
    %262 = arith.mulf %261, %260 : vector<16x16xf32>
    %263 = arith.addf %259, %262 : vector<16x16xf32>
    %264 = vector.extract_strided_slice %247 {offsets = [0, 4], sizes = [16, 16], strides = [1, 1]} : vector<16x22xf32> to vector<16x16xf32>
    %265 = vector.broadcast %34 : f32 to vector<16x16xf32>
    %266 = arith.mulf %265, %264 : vector<16x16xf32>
    %267 = arith.addf %263, %266 : vector<16x16xf32>
    %268 = vector.extract_strided_slice %247 {offsets = [0, 5], sizes = [16, 16], strides = [1, 1]} : vector<16x22xf32> to vector<16x16xf32>
    %269 = vector.broadcast %35 : f32 to vector<16x16xf32>
    %270 = arith.mulf %269, %268 : vector<16x16xf32>
    %271 = arith.addf %267, %270 : vector<16x16xf32>
    %272 = vector.extract_strided_slice %247 {offsets = [0, 6], sizes = [16, 16], strides = [1, 1]} : vector<16x22xf32> to vector<16x16xf32>
    %273 = vector.broadcast %36 : f32 to vector<16x16xf32>
    %274 = arith.mulf %273, %272 : vector<16x16xf32>
    %275 = arith.addf %271, %274 : vector<16x16xf32>
    %c0_40 = arith.constant 0 : index
    %c5_41 = arith.constant 5 : index
    %c0_42 = arith.constant 0 : index
    %276 = vector.load %arg4[%c0_40, %c5_41, %c0_42] : memref<2x22x22xf32, #tpu.memory_space<vmem>>, vector<1x16x22xf32>
    %277 = vector.shape_cast %276 : vector<1x16x22xf32> to vector<16x22xf32>
    %278 = vector.extract_strided_slice %277 {offsets = [0, 0], sizes = [16, 16], strides = [1, 1]} : vector<16x22xf32> to vector<16x16xf32>
    %279 = vector.broadcast %37 : f32 to vector<16x16xf32>
    %280 = arith.mulf %279, %278 : vector<16x16xf32>
    %281 = arith.addf %275, %280 : vector<16x16xf32>
    %282 = vector.extract_strided_slice %277 {offsets = [0, 1], sizes = [16, 16], strides = [1, 1]} : vector<16x22xf32> to vector<16x16xf32>
    %283 = vector.broadcast %38 : f32 to vector<16x16xf32>
    %284 = arith.mulf %283, %282 : vector<16x16xf32>
    %285 = arith.addf %281, %284 : vector<16x16xf32>
    %286 = vector.extract_strided_slice %277 {offsets = [0, 2], sizes = [16, 16], strides = [1, 1]} : vector<16x22xf32> to vector<16x16xf32>
    %287 = vector.broadcast %39 : f32 to vector<16x16xf32>
    %288 = arith.mulf %287, %286 : vector<16x16xf32>
    %289 = arith.addf %285, %288 : vector<16x16xf32>
    %290 = vector.extract_strided_slice %277 {offsets = [0, 3], sizes = [16, 16], strides = [1, 1]} : vector<16x22xf32> to vector<16x16xf32>
    %291 = vector.broadcast %40 : f32 to vector<16x16xf32>
    %292 = arith.mulf %291, %290 : vector<16x16xf32>
    %293 = arith.addf %289, %292 : vector<16x16xf32>
    %294 = vector.extract_strided_slice %277 {offsets = [0, 4], sizes = [16, 16], strides = [1, 1]} : vector<16x22xf32> to vector<16x16xf32>
    %295 = vector.broadcast %41 : f32 to vector<16x16xf32>
    %296 = arith.mulf %295, %294 : vector<16x16xf32>
    %297 = arith.addf %293, %296 : vector<16x16xf32>
    %298 = vector.extract_strided_slice %277 {offsets = [0, 5], sizes = [16, 16], strides = [1, 1]} : vector<16x22xf32> to vector<16x16xf32>
    %299 = vector.broadcast %42 : f32 to vector<16x16xf32>
    %300 = arith.mulf %299, %298 : vector<16x16xf32>
    %301 = arith.addf %297, %300 : vector<16x16xf32>
    %302 = vector.extract_strided_slice %277 {offsets = [0, 6], sizes = [16, 16], strides = [1, 1]} : vector<16x22xf32> to vector<16x16xf32>
    %303 = vector.broadcast %43 : f32 to vector<16x16xf32>
    %304 = arith.mulf %303, %302 : vector<16x16xf32>
    %305 = arith.addf %301, %304 : vector<16x16xf32>
    %c0_43 = arith.constant 0 : index
    %c6_44 = arith.constant 6 : index
    %c0_45 = arith.constant 0 : index
    %306 = vector.load %arg4[%c0_43, %c6_44, %c0_45] : memref<2x22x22xf32, #tpu.memory_space<vmem>>, vector<1x16x22xf32>
    %307 = vector.shape_cast %306 : vector<1x16x22xf32> to vector<16x22xf32>
    %308 = vector.extract_strided_slice %307 {offsets = [0, 0], sizes = [16, 16], strides = [1, 1]} : vector<16x22xf32> to vector<16x16xf32>
    %309 = vector.broadcast %44 : f32 to vector<16x16xf32>
    %310 = arith.mulf %309, %308 : vector<16x16xf32>
    %311 = arith.addf %305, %310 : vector<16x16xf32>
    %312 = vector.extract_strided_slice %307 {offsets = [0, 1], sizes = [16, 16], strides = [1, 1]} : vector<16x22xf32> to vector<16x16xf32>
    %313 = vector.broadcast %45 : f32 to vector<16x16xf32>
    %314 = arith.mulf %313, %312 : vector<16x16xf32>
    %315 = arith.addf %311, %314 : vector<16x16xf32>
    %316 = vector.extract_strided_slice %307 {offsets = [0, 2], sizes = [16, 16], strides = [1, 1]} : vector<16x22xf32> to vector<16x16xf32>
    %317 = vector.broadcast %46 : f32 to vector<16x16xf32>
    %318 = arith.mulf %317, %316 : vector<16x16xf32>
    %319 = arith.addf %315, %318 : vector<16x16xf32>
    %320 = vector.extract_strided_slice %307 {offsets = [0, 3], sizes = [16, 16], strides = [1, 1]} : vector<16x22xf32> to vector<16x16xf32>
    %321 = vector.broadcast %47 : f32 to vector<16x16xf32>
    %322 = arith.mulf %321, %320 : vector<16x16xf32>
    %323 = arith.addf %319, %322 : vector<16x16xf32>
    %324 = vector.extract_strided_slice %307 {offsets = [0, 4], sizes = [16, 16], strides = [1, 1]} : vector<16x22xf32> to vector<16x16xf32>
    %325 = vector.broadcast %48 : f32 to vector<16x16xf32>
    %326 = arith.mulf %325, %324 : vector<16x16xf32>
    %327 = arith.addf %323, %326 : vector<16x16xf32>
    %328 = vector.extract_strided_slice %307 {offsets = [0, 5], sizes = [16, 16], strides = [1, 1]} : vector<16x22xf32> to vector<16x16xf32>
    %329 = vector.broadcast %49 : f32 to vector<16x16xf32>
    %330 = arith.mulf %329, %328 : vector<16x16xf32>
    %331 = arith.addf %327, %330 : vector<16x16xf32>
    %332 = vector.extract_strided_slice %307 {offsets = [0, 6], sizes = [16, 16], strides = [1, 1]} : vector<16x22xf32> to vector<16x16xf32>
    %333 = vector.broadcast %50 : f32 to vector<16x16xf32>
    %334 = arith.mulf %333, %332 : vector<16x16xf32>
    %335 = arith.addf %331, %334 : vector<16x16xf32>
    %c1_46 = arith.constant 1 : index
    %c0_47 = arith.constant 0 : index
    %c0_48 = arith.constant 0 : index
    %336 = vector.load %arg4[%c1_46, %c0_47, %c0_48] : memref<2x22x22xf32, #tpu.memory_space<vmem>>, vector<1x16x22xf32>
    %337 = vector.shape_cast %336 : vector<1x16x22xf32> to vector<16x22xf32>
    %338 = vector.extract_strided_slice %337 {offsets = [0, 0], sizes = [16, 16], strides = [1, 1]} : vector<16x22xf32> to vector<16x16xf32>
    %339 = vector.broadcast %51 : f32 to vector<16x16xf32>
    %340 = arith.mulf %339, %338 : vector<16x16xf32>
    %341 = arith.addf %335, %340 : vector<16x16xf32>
    %342 = vector.extract_strided_slice %337 {offsets = [0, 1], sizes = [16, 16], strides = [1, 1]} : vector<16x22xf32> to vector<16x16xf32>
    %343 = vector.broadcast %52 : f32 to vector<16x16xf32>
    %344 = arith.mulf %343, %342 : vector<16x16xf32>
    %345 = arith.addf %341, %344 : vector<16x16xf32>
    %346 = vector.extract_strided_slice %337 {offsets = [0, 2], sizes = [16, 16], strides = [1, 1]} : vector<16x22xf32> to vector<16x16xf32>
    %347 = vector.broadcast %53 : f32 to vector<16x16xf32>
    %348 = arith.mulf %347, %346 : vector<16x16xf32>
    %349 = arith.addf %345, %348 : vector<16x16xf32>
    %350 = vector.extract_strided_slice %337 {offsets = [0, 3], sizes = [16, 16], strides = [1, 1]} : vector<16x22xf32> to vector<16x16xf32>
    %351 = vector.broadcast %54 : f32 to vector<16x16xf32>
    %352 = arith.mulf %351, %350 : vector<16x16xf32>
    %353 = arith.addf %349, %352 : vector<16x16xf32>
    %354 = vector.extract_strided_slice %337 {offsets = [0, 4], sizes = [16, 16], strides = [1, 1]} : vector<16x22xf32> to vector<16x16xf32>
    %355 = vector.broadcast %55 : f32 to vector<16x16xf32>
    %356 = arith.mulf %355, %354 : vector<16x16xf32>
    %357 = arith.addf %353, %356 : vector<16x16xf32>
    %358 = vector.extract_strided_slice %337 {offsets = [0, 5], sizes = [16, 16], strides = [1, 1]} : vector<16x22xf32> to vector<16x16xf32>
    %359 = vector.broadcast %56 : f32 to vector<16x16xf32>
    %360 = arith.mulf %359, %358 : vector<16x16xf32>
    %361 = arith.addf %357, %360 : vector<16x16xf32>
    %362 = vector.extract_strided_slice %337 {offsets = [0, 6], sizes = [16, 16], strides = [1, 1]} : vector<16x22xf32> to vector<16x16xf32>
    %363 = vector.broadcast %57 : f32 to vector<16x16xf32>
    %364 = arith.mulf %363, %362 : vector<16x16xf32>
    %365 = arith.addf %361, %364 : vector<16x16xf32>
    %c1_49 = arith.constant 1 : index
    %c1_50 = arith.constant 1 : index
    %c0_51 = arith.constant 0 : index
    %366 = vector.load %arg4[%c1_49, %c1_50, %c0_51] : memref<2x22x22xf32, #tpu.memory_space<vmem>>, vector<1x16x22xf32>
    %367 = vector.shape_cast %366 : vector<1x16x22xf32> to vector<16x22xf32>
    %368 = vector.extract_strided_slice %367 {offsets = [0, 0], sizes = [16, 16], strides = [1, 1]} : vector<16x22xf32> to vector<16x16xf32>
    %369 = vector.broadcast %58 : f32 to vector<16x16xf32>
    %370 = arith.mulf %369, %368 : vector<16x16xf32>
    %371 = arith.addf %365, %370 : vector<16x16xf32>
    %372 = vector.extract_strided_slice %367 {offsets = [0, 1], sizes = [16, 16], strides = [1, 1]} : vector<16x22xf32> to vector<16x16xf32>
    %373 = vector.broadcast %59 : f32 to vector<16x16xf32>
    %374 = arith.mulf %373, %372 : vector<16x16xf32>
    %375 = arith.addf %371, %374 : vector<16x16xf32>
    %376 = vector.extract_strided_slice %367 {offsets = [0, 2], sizes = [16, 16], strides = [1, 1]} : vector<16x22xf32> to vector<16x16xf32>
    %377 = vector.broadcast %60 : f32 to vector<16x16xf32>
    %378 = arith.mulf %377, %376 : vector<16x16xf32>
    %379 = arith.addf %375, %378 : vector<16x16xf32>
    %380 = vector.extract_strided_slice %367 {offsets = [0, 3], sizes = [16, 16], strides = [1, 1]} : vector<16x22xf32> to vector<16x16xf32>
    %381 = vector.broadcast %61 : f32 to vector<16x16xf32>
    %382 = arith.mulf %381, %380 : vector<16x16xf32>
    %383 = arith.addf %379, %382 : vector<16x16xf32>
    %384 = vector.extract_strided_slice %367 {offsets = [0, 4], sizes = [16, 16], strides = [1, 1]} : vector<16x22xf32> to vector<16x16xf32>
    %385 = vector.broadcast %62 : f32 to vector<16x16xf32>
    %386 = arith.mulf %385, %384 : vector<16x16xf32>
    %387 = arith.addf %383, %386 : vector<16x16xf32>
    %388 = vector.extract_strided_slice %367 {offsets = [0, 5], sizes = [16, 16], strides = [1, 1]} : vector<16x22xf32> to vector<16x16xf32>
    %389 = vector.broadcast %63 : f32 to vector<16x16xf32>
    %390 = arith.mulf %389, %388 : vector<16x16xf32>
    %391 = arith.addf %387, %390 : vector<16x16xf32>
    %392 = vector.extract_strided_slice %367 {offsets = [0, 6], sizes = [16, 16], strides = [1, 1]} : vector<16x22xf32> to vector<16x16xf32>
    %393 = vector.broadcast %64 : f32 to vector<16x16xf32>
    %394 = arith.mulf %393, %392 : vector<16x16xf32>
    %395 = arith.addf %391, %394 : vector<16x16xf32>
    %c1_52 = arith.constant 1 : index
    %c2_53 = arith.constant 2 : index
    %c0_54 = arith.constant 0 : index
    %396 = vector.load %arg4[%c1_52, %c2_53, %c0_54] : memref<2x22x22xf32, #tpu.memory_space<vmem>>, vector<1x16x22xf32>
    %397 = vector.shape_cast %396 : vector<1x16x22xf32> to vector<16x22xf32>
    %398 = vector.extract_strided_slice %397 {offsets = [0, 0], sizes = [16, 16], strides = [1, 1]} : vector<16x22xf32> to vector<16x16xf32>
    %399 = vector.broadcast %65 : f32 to vector<16x16xf32>
    %400 = arith.mulf %399, %398 : vector<16x16xf32>
    %401 = arith.addf %395, %400 : vector<16x16xf32>
    %402 = vector.extract_strided_slice %397 {offsets = [0, 1], sizes = [16, 16], strides = [1, 1]} : vector<16x22xf32> to vector<16x16xf32>
    %403 = vector.broadcast %66 : f32 to vector<16x16xf32>
    %404 = arith.mulf %403, %402 : vector<16x16xf32>
    %405 = arith.addf %401, %404 : vector<16x16xf32>
    %406 = vector.extract_strided_slice %397 {offsets = [0, 2], sizes = [16, 16], strides = [1, 1]} : vector<16x22xf32> to vector<16x16xf32>
    %407 = vector.broadcast %67 : f32 to vector<16x16xf32>
    %408 = arith.mulf %407, %406 : vector<16x16xf32>
    %409 = arith.addf %405, %408 : vector<16x16xf32>
    %410 = vector.extract_strided_slice %397 {offsets = [0, 3], sizes = [16, 16], strides = [1, 1]} : vector<16x22xf32> to vector<16x16xf32>
    %411 = vector.broadcast %68 : f32 to vector<16x16xf32>
    %412 = arith.mulf %411, %410 : vector<16x16xf32>
    %413 = arith.addf %409, %412 : vector<16x16xf32>
    %414 = vector.extract_strided_slice %397 {offsets = [0, 4], sizes = [16, 16], strides = [1, 1]} : vector<16x22xf32> to vector<16x16xf32>
    %415 = vector.broadcast %69 : f32 to vector<16x16xf32>
    %416 = arith.mulf %415, %414 : vector<16x16xf32>
    %417 = arith.addf %413, %416 : vector<16x16xf32>
    %418 = vector.extract_strided_slice %397 {offsets = [0, 5], sizes = [16, 16], strides = [1, 1]} : vector<16x22xf32> to vector<16x16xf32>
    %419 = vector.broadcast %70 : f32 to vector<16x16xf32>
    %420 = arith.mulf %419, %418 : vector<16x16xf32>
    %421 = arith.addf %417, %420 : vector<16x16xf32>
    %422 = vector.extract_strided_slice %397 {offsets = [0, 6], sizes = [16, 16], strides = [1, 1]} : vector<16x22xf32> to vector<16x16xf32>
    %423 = vector.broadcast %71 : f32 to vector<16x16xf32>
    %424 = arith.mulf %423, %422 : vector<16x16xf32>
    %425 = arith.addf %421, %424 : vector<16x16xf32>
    %c1_55 = arith.constant 1 : index
    %c3_56 = arith.constant 3 : index
    %c0_57 = arith.constant 0 : index
    %426 = vector.load %arg4[%c1_55, %c3_56, %c0_57] : memref<2x22x22xf32, #tpu.memory_space<vmem>>, vector<1x16x22xf32>
    %427 = vector.shape_cast %426 : vector<1x16x22xf32> to vector<16x22xf32>
    %428 = vector.extract_strided_slice %427 {offsets = [0, 0], sizes = [16, 16], strides = [1, 1]} : vector<16x22xf32> to vector<16x16xf32>
    %429 = vector.broadcast %72 : f32 to vector<16x16xf32>
    %430 = arith.mulf %429, %428 : vector<16x16xf32>
    %431 = arith.addf %425, %430 : vector<16x16xf32>
    %432 = vector.extract_strided_slice %427 {offsets = [0, 1], sizes = [16, 16], strides = [1, 1]} : vector<16x22xf32> to vector<16x16xf32>
    %433 = vector.broadcast %73 : f32 to vector<16x16xf32>
    %434 = arith.mulf %433, %432 : vector<16x16xf32>
    %435 = arith.addf %431, %434 : vector<16x16xf32>
    %436 = vector.extract_strided_slice %427 {offsets = [0, 2], sizes = [16, 16], strides = [1, 1]} : vector<16x22xf32> to vector<16x16xf32>
    %437 = vector.broadcast %74 : f32 to vector<16x16xf32>
    %438 = arith.mulf %437, %436 : vector<16x16xf32>
    %439 = arith.addf %435, %438 : vector<16x16xf32>
    %440 = vector.extract_strided_slice %427 {offsets = [0, 3], sizes = [16, 16], strides = [1, 1]} : vector<16x22xf32> to vector<16x16xf32>
    %441 = vector.broadcast %75 : f32 to vector<16x16xf32>
    %442 = arith.mulf %441, %440 : vector<16x16xf32>
    %443 = arith.addf %439, %442 : vector<16x16xf32>
    %444 = vector.extract_strided_slice %427 {offsets = [0, 4], sizes = [16, 16], strides = [1, 1]} : vector<16x22xf32> to vector<16x16xf32>
    %445 = vector.broadcast %76 : f32 to vector<16x16xf32>
    %446 = arith.mulf %445, %444 : vector<16x16xf32>
    %447 = arith.addf %443, %446 : vector<16x16xf32>
    %448 = vector.extract_strided_slice %427 {offsets = [0, 5], sizes = [16, 16], strides = [1, 1]} : vector<16x22xf32> to vector<16x16xf32>
    %449 = vector.broadcast %77 : f32 to vector<16x16xf32>
    %450 = arith.mulf %449, %448 : vector<16x16xf32>
    %451 = arith.addf %447, %450 : vector<16x16xf32>
    %452 = vector.extract_strided_slice %427 {offsets = [0, 6], sizes = [16, 16], strides = [1, 1]} : vector<16x22xf32> to vector<16x16xf32>
    %453 = vector.broadcast %78 : f32 to vector<16x16xf32>
    %454 = arith.mulf %453, %452 : vector<16x16xf32>
    %455 = arith.addf %451, %454 : vector<16x16xf32>
    %c1_58 = arith.constant 1 : index
    %c4_59 = arith.constant 4 : index
    %c0_60 = arith.constant 0 : index
    %456 = vector.load %arg4[%c1_58, %c4_59, %c0_60] : memref<2x22x22xf32, #tpu.memory_space<vmem>>, vector<1x16x22xf32>
    %457 = vector.shape_cast %456 : vector<1x16x22xf32> to vector<16x22xf32>
    %458 = vector.extract_strided_slice %457 {offsets = [0, 0], sizes = [16, 16], strides = [1, 1]} : vector<16x22xf32> to vector<16x16xf32>
    %459 = vector.broadcast %79 : f32 to vector<16x16xf32>
    %460 = arith.mulf %459, %458 : vector<16x16xf32>
    %461 = arith.addf %455, %460 : vector<16x16xf32>
    %462 = vector.extract_strided_slice %457 {offsets = [0, 1], sizes = [16, 16], strides = [1, 1]} : vector<16x22xf32> to vector<16x16xf32>
    %463 = vector.broadcast %80 : f32 to vector<16x16xf32>
    %464 = arith.mulf %463, %462 : vector<16x16xf32>
    %465 = arith.addf %461, %464 : vector<16x16xf32>
    %466 = vector.extract_strided_slice %457 {offsets = [0, 2], sizes = [16, 16], strides = [1, 1]} : vector<16x22xf32> to vector<16x16xf32>
    %467 = vector.broadcast %81 : f32 to vector<16x16xf32>
    %468 = arith.mulf %467, %466 : vector<16x16xf32>
    %469 = arith.addf %465, %468 : vector<16x16xf32>
    %470 = vector.extract_strided_slice %457 {offsets = [0, 3], sizes = [16, 16], strides = [1, 1]} : vector<16x22xf32> to vector<16x16xf32>
    %471 = vector.broadcast %82 : f32 to vector<16x16xf32>
    %472 = arith.mulf %471, %470 : vector<16x16xf32>
    %473 = arith.addf %469, %472 : vector<16x16xf32>
    %474 = vector.extract_strided_slice %457 {offsets = [0, 4], sizes = [16, 16], strides = [1, 1]} : vector<16x22xf32> to vector<16x16xf32>
    %475 = vector.broadcast %83 : f32 to vector<16x16xf32>
    %476 = arith.mulf %475, %474 : vector<16x16xf32>
    %477 = arith.addf %473, %476 : vector<16x16xf32>
    %478 = vector.extract_strided_slice %457 {offsets = [0, 5], sizes = [16, 16], strides = [1, 1]} : vector<16x22xf32> to vector<16x16xf32>
    %479 = vector.broadcast %84 : f32 to vector<16x16xf32>
    %480 = arith.mulf %479, %478 : vector<16x16xf32>
    %481 = arith.addf %477, %480 : vector<16x16xf32>
    %482 = vector.extract_strided_slice %457 {offsets = [0, 6], sizes = [16, 16], strides = [1, 1]} : vector<16x22xf32> to vector<16x16xf32>
    %483 = vector.broadcast %85 : f32 to vector<16x16xf32>
    %484 = arith.mulf %483, %482 : vector<16x16xf32>
    %485 = arith.addf %481, %484 : vector<16x16xf32>
    %c1_61 = arith.constant 1 : index
    %c5_62 = arith.constant 5 : index
    %c0_63 = arith.constant 0 : index
    %486 = vector.load %arg4[%c1_61, %c5_62, %c0_63] : memref<2x22x22xf32, #tpu.memory_space<vmem>>, vector<1x16x22xf32>
    %487 = vector.shape_cast %486 : vector<1x16x22xf32> to vector<16x22xf32>
    %488 = vector.extract_strided_slice %487 {offsets = [0, 0], sizes = [16, 16], strides = [1, 1]} : vector<16x22xf32> to vector<16x16xf32>
    %489 = vector.broadcast %86 : f32 to vector<16x16xf32>
    %490 = arith.mulf %489, %488 : vector<16x16xf32>
    %491 = arith.addf %485, %490 : vector<16x16xf32>
    %492 = vector.extract_strided_slice %487 {offsets = [0, 1], sizes = [16, 16], strides = [1, 1]} : vector<16x22xf32> to vector<16x16xf32>
    %493 = vector.broadcast %87 : f32 to vector<16x16xf32>
    %494 = arith.mulf %493, %492 : vector<16x16xf32>
    %495 = arith.addf %491, %494 : vector<16x16xf32>
    %496 = vector.extract_strided_slice %487 {offsets = [0, 2], sizes = [16, 16], strides = [1, 1]} : vector<16x22xf32> to vector<16x16xf32>
    %497 = vector.broadcast %88 : f32 to vector<16x16xf32>
    %498 = arith.mulf %497, %496 : vector<16x16xf32>
    %499 = arith.addf %495, %498 : vector<16x16xf32>
    %500 = vector.extract_strided_slice %487 {offsets = [0, 3], sizes = [16, 16], strides = [1, 1]} : vector<16x22xf32> to vector<16x16xf32>
    %501 = vector.broadcast %89 : f32 to vector<16x16xf32>
    %502 = arith.mulf %501, %500 : vector<16x16xf32>
    %503 = arith.addf %499, %502 : vector<16x16xf32>
    %504 = vector.extract_strided_slice %487 {offsets = [0, 4], sizes = [16, 16], strides = [1, 1]} : vector<16x22xf32> to vector<16x16xf32>
    %505 = vector.broadcast %90 : f32 to vector<16x16xf32>
    %506 = arith.mulf %505, %504 : vector<16x16xf32>
    %507 = arith.addf %503, %506 : vector<16x16xf32>
    %508 = vector.extract_strided_slice %487 {offsets = [0, 5], sizes = [16, 16], strides = [1, 1]} : vector<16x22xf32> to vector<16x16xf32>
    %509 = vector.broadcast %91 : f32 to vector<16x16xf32>
    %510 = arith.mulf %509, %508 : vector<16x16xf32>
    %511 = arith.addf %507, %510 : vector<16x16xf32>
    %512 = vector.extract_strided_slice %487 {offsets = [0, 6], sizes = [16, 16], strides = [1, 1]} : vector<16x22xf32> to vector<16x16xf32>
    %513 = vector.broadcast %92 : f32 to vector<16x16xf32>
    %514 = arith.mulf %513, %512 : vector<16x16xf32>
    %515 = arith.addf %511, %514 : vector<16x16xf32>
    %c1_64 = arith.constant 1 : index
    %c6_65 = arith.constant 6 : index
    %c0_66 = arith.constant 0 : index
    %516 = vector.load %arg4[%c1_64, %c6_65, %c0_66] : memref<2x22x22xf32, #tpu.memory_space<vmem>>, vector<1x16x22xf32>
    %517 = vector.shape_cast %516 : vector<1x16x22xf32> to vector<16x22xf32>
    %518 = vector.extract_strided_slice %517 {offsets = [0, 0], sizes = [16, 16], strides = [1, 1]} : vector<16x22xf32> to vector<16x16xf32>
    %519 = vector.broadcast %93 : f32 to vector<16x16xf32>
    %520 = arith.mulf %519, %518 : vector<16x16xf32>
    %521 = arith.addf %515, %520 : vector<16x16xf32>
    %522 = vector.extract_strided_slice %517 {offsets = [0, 1], sizes = [16, 16], strides = [1, 1]} : vector<16x22xf32> to vector<16x16xf32>
    %523 = vector.broadcast %94 : f32 to vector<16x16xf32>
    %524 = arith.mulf %523, %522 : vector<16x16xf32>
    %525 = arith.addf %521, %524 : vector<16x16xf32>
    %526 = vector.extract_strided_slice %517 {offsets = [0, 2], sizes = [16, 16], strides = [1, 1]} : vector<16x22xf32> to vector<16x16xf32>
    %527 = vector.broadcast %95 : f32 to vector<16x16xf32>
    %528 = arith.mulf %527, %526 : vector<16x16xf32>
    %529 = arith.addf %525, %528 : vector<16x16xf32>
    %530 = vector.extract_strided_slice %517 {offsets = [0, 3], sizes = [16, 16], strides = [1, 1]} : vector<16x22xf32> to vector<16x16xf32>
    %531 = vector.broadcast %96 : f32 to vector<16x16xf32>
    %532 = arith.mulf %531, %530 : vector<16x16xf32>
    %533 = arith.addf %529, %532 : vector<16x16xf32>
    %534 = vector.extract_strided_slice %517 {offsets = [0, 4], sizes = [16, 16], strides = [1, 1]} : vector<16x22xf32> to vector<16x16xf32>
    %535 = vector.broadcast %97 : f32 to vector<16x16xf32>
    %536 = arith.mulf %535, %534 : vector<16x16xf32>
    %537 = arith.addf %533, %536 : vector<16x16xf32>
    %538 = vector.extract_strided_slice %517 {offsets = [0, 5], sizes = [16, 16], strides = [1, 1]} : vector<16x22xf32> to vector<16x16xf32>
    %539 = vector.broadcast %98 : f32 to vector<16x16xf32>
    %540 = arith.mulf %539, %538 : vector<16x16xf32>
    %541 = arith.addf %537, %540 : vector<16x16xf32>
    %542 = vector.extract_strided_slice %517 {offsets = [0, 6], sizes = [16, 16], strides = [1, 1]} : vector<16x22xf32> to vector<16x16xf32>
    %543 = vector.broadcast %99 : f32 to vector<16x16xf32>
    %544 = arith.mulf %543, %542 : vector<16x16xf32>
    %545 = arith.addf %541, %544 : vector<16x16xf32>
    %546 = arith.negf %545 : vector<16x16xf32>
    %547 = math.exp %546 : vector<16x16xf32>
    %cst_67 = arith.constant 1.000000e+00 : f32
    %548 = vector.broadcast %cst_67 : f32 to vector<16x16xf32>
    %549 = arith.addf %548, %547 : vector<16x16xf32>
    %550 = arith.divf %548, %549 : vector<16x16xf32>
    %c0_68 = arith.constant 0 : index
    %c0_69 = arith.constant 0 : index
    %c0_70 = arith.constant 0 : index
    %c0_71 = arith.constant 0 : index
    %551 = vector.load %arg3[%c0_68, %c0_69, %c0_70, %c0_71] : memref<1x1x16x16xf32, #tpu.memory_space<vmem>>, vector<1x1x16x16xf32>
    %552 = vector.shape_cast %551 : vector<1x1x16x16xf32> to vector<16x16xf32>
    %553 = vector.shape_cast %550 : vector<16x16xf32> to vector<1x1x16x16xf32>
    tpu.vector_store %arg3[%c0_68, %c0_69, %c0_70, %c0_71], %553 {strides = array<i32>} : memref<1x1x16x16xf32, #tpu.memory_space<vmem>>, vector<1x1x16x16xf32>,
    return
  }
  func.func @transform_0(%arg0: i32) -> (i32, i32, i32, i32) {
    %c0_i32 = arith.constant 0 : i32
    %c0_i32_0 = arith.constant 0 : i32
    %c0_i32_1 = arith.constant 0 : i32
    %c0_i32_2 = arith.constant 0 : i32
    return %arg0, %c0_i32, %c0_i32_0, %c0_i32_1 : i32, i32, i32, i32
  }
  func.func @transform_1(%arg0: i32) -> i32 {
    %c0_i32 = arith.constant 0 : i32
    %c0_i32_0 = arith.constant 0 : i32
    return %c0_i32 : i32
  }
  func.func @transform_2(%arg0: i32) -> (i32, i32, i32, i32) {
    %c0_i32 = arith.constant 0 : i32
    %c0_i32_0 = arith.constant 0 : i32
    %c0_i32_1 = arith.constant 0 : i32
    %c0_i32_2 = arith.constant 0 : i32
    return %arg0, %c0_i32, %c0_i32_0, %c0_i32_1 : i32, i32, i32, i32
  }
}

</mosaic_0001>

<llo_original>
// kernel: spatial_attention.1
$region0: #{spatial_attention.1}
  #allocation0 [shape = 'u32[]', space=smem, size = 0x4, offset = 0x4, fixed_abs, tag = 'smem constant byte address 0x4 - core index']
  #allocation1 [shape = 'u32[144,128]{1,0:T(1,128)}', space=vmem, size = 0x12000, scoped, tag = 'internal scratch']
  #allocation2 [shape = 'f32[2,22,22]{2,1,0:T(8,128)}', space=vmem, size = 0x6000, scoped, tag = 'scratch operand']
  %s0 = inlined_call_operand.hbm [shape: f32[2,4,16,16], index: 0, kind: input, shape index: {}]
  %s1 = inlined_call_operand.vmem [shape: f32[98], index: 1, kind: input, shape index: {}]
  %s2 = inlined_call_operand.hbm [shape: f32[2,1,16,16], index: 2, kind: output, shape index: {}]
  %s3 = sld [smem:[#allocation0]]
  $region49: #{spatial_attention.1} parent=0
    _
  %s5 = ssub.s32 1, %s3
  %s6 = scalar_select 0, %s5, %s3
  $region1: #{spatial_attention.1} parent=0
    #allocation3 [shape = 'u8[65536]{0}', space=vmem, size = 0x10000, scoped, tag = 'input window, operand 0']
    #allocation4 [shape = 's32[2]{0}', space=sflag, size = 0x8, scoped, tag = 'scoped memory for spatial_attention.1']
    #allocation5 [shape = 's32[2]{0}', space=sflag, size = 0x8, scoped, tag = 'scoped memory for spatial_attention.1']
    #allocation6 [shape = 's32[2]{0}', space=sflag, size = 0x8, scoped, tag = 'scoped memory for spatial_attention.1']
    #allocation7 [shape = 'u8[512]{0}', space=smem, size = 0x200, scoped, tag = 'input window, operand 1, single buffered']
    #allocation8 [shape = 'u8[16384]{0}', space=vmem, size = 0x4000, scoped, tag = 'output window, operand 0']
    %7 = vsyncpa [#allocation4], 0
    %s8 = scalar_lea.sflag [#allocation4], 1
    %9 = vsyncpa %s8, 0
    %10 = vsyncpa [#allocation6], 0
    %11 = vsyncpa [#allocation5], 0
    %s12 = scalar_lea.sflag [#allocation5], 1
    %13 = vsyncpa %s12, 0
    loop: start=0, step=1, limit=4
    $region2: #{spatial_attention.1} parent=1 // loop_pre_header
      _
    $region3: #{spatial_attention.1} parent=1 // loop_header
      %s15 = sphi 0, %s19
      %p16 = scmp.ge.s32.totalorder %s15, 4
      %s25 = sphi 0, %s27
      %s28 = sphi 0, %s25
      %s29 = sphi 0, %s28
      %s45 = sphi 0, %s29
      %s49 = sphi 0, %s49
      %s51 = sphi 0, %s49
      %s52 = sphi 0, %s51
      %s66 = sphi 0, %s52
      %s72 = sphi 0, %s74
      %s75 = sphi 0, %s72
      %s76 = sphi 0, %s75
      %s92 = sphi 0, %s76
    $region4: #{spatial_attention.1} parent=1 // loop_header_branch
      %18 = sbr.rel (%p16) target = $region8
    $region5: #{spatial_attention.1} parent=1 // loop_body
      %s20 = ssub.s32 %s15, 1
      %s21 = ssub.s32 %s15, 2
      %s22 = sadd.s32 %s15, 1
      %s23 = ssub.s32 %s15, %s22
      %p24 = scmp.eq.s32.totalorder %s23, 0
      %s26 = sadd.s32 %s25, 1
      %s27 = scalar_select %p24, %s25, %s26
      %p30 = pneg %p24
      %p31 = scmp.eq.s32.totalorder %s15, 1
      %p32 = por %p30, %p31
      %p33 = scmp.ne.s32.totalorder %s25, %s28
      %p34 = scmp.eq.s32.totalorder %s15, 0
      %p35 = por %p33, %p34
      %p36 = scmp.ne.s32.totalorder %s25, %s28
      %p37 = scmp.eq.s32.totalorder %s20, 1
      %p38 = por %p36, %p37
      %p39 = scmp.ne.s32.totalorder %s28, %s29
      %p40 = scmp.eq.s32.totalorder %s20, 0
      %p41 = por %p39, %p40
      %p42 = scmp.ne.s32.totalorder %s28, %s29
      %p43 = scmp.eq.s32.totalorder %s21, 1
      %p44 = por %p42, %p43
      %p46 = scmp.ne.s32.totalorder %s29, %s45
      %p47 = scmp.eq.s32.totalorder %s21, 0
      %p48 = por %p46, %p47
      %s50 = sadd.s32 %s49, 1
      %p53 = scmp.eq.s32.totalorder %s15, 1
      %p54 = scmp.ne.s32.totalorder %s49, %s51
      %p55 = scmp.eq.s32.totalorder %s15, 0
      %p56 = por %p54, %p55
      %p57 = scmp.ne.s32.totalorder %s49, %s51
      %p58 = scmp.eq.s32.totalorder %s20, 1
      %p59 = por %p57, %p58
      %p60 = scmp.ne.s32.totalorder %s51, %s52
      %p61 = scmp.eq.s32.totalorder %s20, 0
      %p62 = por %p60, %p61
      %p63 = scmp.ne.s32.totalorder %s51, %s52
      %p64 = scmp.eq.s32.totalorder %s21, 1
      %p65 = por %p63, %p64
      %p67 = scmp.ne.s32.totalorder %s52, %s66
      %p68 = scmp.eq.s32.totalorder %s21, 0
      %p69 = por %p67, %p68
      %s70 = ssub.s32 %s15, %s22
      %p71 = scmp.eq.s32.totalorder %s70, 0
      %s73 = sadd.s32 %s72, 1
      %s74 = scalar_select %p71, %s72, %s73
      %p77 = pneg %p71
      %p78 = scmp.eq.s32.totalorder %s15, 1
      %p79 = por %p77, %p78
      %p80 = scmp.ne.s32.totalorder %s72, %s75
      %p81 = scmp.eq.s32.totalorder %s15, 0
      %p82 = por %p80, %p81
      %p83 = scmp.ne.s32.totalorder %s72, %s75
      %p84 = scmp.eq.s32.totalorder %s20, 1
      %p85 = por %p83, %p84
      %p86 = scmp.ne.s32.totalorder %s75, %s76
      %p87 = scmp.eq.s32.totalorder %s20, 0
      %p88 = por %p86, %p87
      %p89 = scmp.ne.s32.totalorder %s75, %s76
      %p90 = scmp.eq.s32.totalorder %s21, 1
      %p91 = por %p89, %p90
      %p93 = scmp.ne.s32.totalorder %s76, %s92
      %p94 = scmp.eq.s32.totalorder %s21, 0
      %p95 = por %p93, %p94
      %p96 = scmp.le.s32.totalorder 1, %s15
      %p97 = scmp.lt.s32.totalorder %s15, 3
      %p98 = pnand %p96, %p97
      %p99 = pneg %p98
      // Predicated region
      $region9: #{spatial_attention.1} parent=5 // pred_check
        _
      $region10: #{spatial_attention.1} parent=5 // pred_check_branch
        %101 = sbr.rel (%p98) target = $region12
      $region11: #{spatial_attention.1} parent=5 // pred_region
        %s102 = ssub.s32 %s15, 1
        // Predicated region
        $region13: #{spatial_attention.1} parent=11 // pred_check
          %p103 = pneg %p62
        $region14: #{spatial_attention.1} parent=11 // pred_check_branch
          %105 = sbr.rel (%p103) target = $region16
        $region15: #{spatial_attention.1} parent=11 // pred_region
          %s107 = ssub.s32 16, 16
          %108 = vsyncadd [#allocation6], %s107
          %s110 = sshll.u32 %s1, 4
          %s111 = int_to_ptr.vmem [resolvable:$true] %s110
          %113 = dma.vmem_to_smem %s111, 16, [#allocation7], [#allocation6]
        $region16: #{spatial_attention.1} parent=11 // pred_fallthru
          _
      $region12: #{spatial_attention.1} parent=5 // pred_fallthru
        _
      %p114 = scmp.lt.s32.totalorder %s15, 2
      // Predicated region
      $region17: #{spatial_attention.1} parent=5 // pred_check
        %p115 = pneg %p114
      $region18: #{spatial_attention.1} parent=5 // pred_check_branch
        %117 = sbr.rel (%p115) target = $region20
      $region19: #{spatial_attention.1} parent=5 // pred_region
        // Predicated region
        $region21: #{spatial_attention.1} parent=19 // pred_check
          %p118 = pneg %p35
        $region22: #{spatial_attention.1} parent=19 // pred_check_branch
          %120 = sbr.rel (%p118) target = $region24
        $region23: #{spatial_attention.1} parent=19 // pred_region
          %s121 = sand.u32 %s25, 1
          %s122 = scalar_lea.sflag [#allocation4], %s121
          %s123 = sand.u32 %s25, 1
          %s124 = smul.addr %s123, 64
          %s125 = scalar_lea.vmem [#allocation3], %s124
          %s127 = ssub.s32 1024, 1024
          %128 = vsyncadd %s122, %s127
          %s129 = smul.addr %s15, 8
          %s130 = smul.addr %s129, 128
          %s131 = scalar_lea.hbm %s0, %s130
          %s132 = sshll.u32 %s125, 4
          %s133 = int_to_ptr.vmem [resolvable:$true] %s132
          %138 = dma.hbm_to_vmem [thread:$0]  %s131, 1024, %s133, %s122, 128, 128, 8
        $region24: #{spatial_attention.1} parent=19 // pred_fallthru
          _
      $region20: #{spatial_attention.1} parent=5 // pred_fallthru
        _
      %p139 = scmp.le.s32.totalorder 1, %s15
      %p140 = scmp.lt.s32.totalorder %s15, 3
      %p141 = pnand %p139, %p140
      %p142 = pneg %p141
      // Predicated region
      $region25: #{spatial_attention.1} parent=5 // pred_check
        _
      $region26: #{spatial_attention.1} parent=5 // pred_check_branch
        %144 = sbr.rel (%p141) target = $region28
      $region27: #{spatial_attention.1} parent=5 // pred_region
        %s145 = ssub.s32 %s15, 1
        %s146 = sand.u32 %s28, 1
        %s147 = scalar_lea.sflag [#allocation4], %s146
        %s148 = sand.u32 %s28, 1
        %s149 = smul.addr %s148, 64
        %s150 = scalar_lea.vmem [#allocation3], %s149
        // Predicated region
        $region29: #{spatial_attention.1} parent=27 // pred_check
          %p151 = pneg %p41
        $region30: #{spatial_attention.1} parent=27 // pred_check_branch
          %153 = sbr.rel (%p151) target = $region32
        $region31: #{spatial_attention.1} parent=27 // pred_region
          %154 = dma.done %s147, 1024
        $region32: #{spatial_attention.1} parent=27 // pred_fallthru
          _
        // Predicated region
        $region33: #{spatial_attention.1} parent=27 // pred_check
          %p155 = pneg %p62
        $region34: #{spatial_attention.1} parent=27 // pred_check_branch
          %157 = sbr.rel (%p155) target = $region36
        $region35: #{spatial_attention.1} parent=27 // pred_region
          %158 = dma.done [#allocation6], 16
        $region36: #{spatial_attention.1} parent=27 // pred_fallthru
          _
        %159 = sfence
        %s160 = sand.u32 %s28, 1
        %s161 = scalar_lea.sflag [#allocation4], %s160
        %s162 = sand.u32 %s28, 1
        %s163 = smul.addr %s162, 64
        %s164 = scalar_lea.vmem [#allocation3], %s163
        %p165 = pneg %p41
        %p166 = pneg %p38
        %p167 = pneg %p62
        %p168 = pneg %p59
        %p169 = pneg %p88
        %p170 = pneg %p85
        %s171 = sand.u32 %s75, 1
        %s172 = scalar_lea.sflag [#allocation5], %s171
        %s173 = sand.u32 %s75, 1
        %s174 = smul.addr %s173, 16
        %s175 = scalar_lea.vmem [#allocation8], %s174
        %vm176 = vcmask 179200
        %177 = vst.msk [vmem:[#allocation2] sm:$0xff] %vm176, 0.0
        %178 = vst.msk [vmem:[#allocation2 + $0x8] sm:$0xff] %vm176, 0.0
        %vm179 = vcmask 177152
        %180 = vst.msk [vmem:[#allocation2 + $0x10] sm:$0x3f] %vm179, 0.0
        %181 = vst.msk [vmem:[#allocation2 + $0x18] sm:$0xff] %vm176, 0.0
        %182 = vst.msk [vmem:[#allocation2 + $0x20] sm:$0xff] %vm176, 0.0
        %183 = vst.msk [vmem:[#allocation2 + $0x28] sm:$0x3f] %vm179, 0.0
        %s184 = sld [smem:[#allocation7]]
        %s185 = sld [smem:[#allocation7 + $0x1]]
        %s186 = sld [smem:[#allocation7 + $0x2]]
        %s187 = sld [smem:[#allocation7 + $0x3]]
        %s188 = sld [smem:[#allocation7 + $0x4]]
        %s189 = sld [smem:[#allocation7 + $0x5]]
        %s190 = sld [smem:[#allocation7 + $0x6]]
        %s191 = sld [smem:[#allocation7 + $0x7]]
        %s192 = sld [smem:[#allocation7 + $0x8]]
        %s193 = sld [smem:[#allocation7 + $0x9]]
        %s194 = sld [smem:[#allocation7 + $0xa]]
        %s195 = sld [smem:[#allocation7 + $0xb]]
        %s196 = sld [smem:[#allocation7 + $0xc]]
        %s197 = sld [smem:[#allocation7 + $0xd]]
        %s198 = sld [smem:[#allocation7 + $0xe]]
        %s199 = sld [smem:[#allocation7 + $0xf]]
        %s200 = sld [smem:[#allocation7 + $0x10]]
        %s201 = sld [smem:[#allocation7 + $0x11]]
        %s202 = sld [smem:[#allocation7 + $0x12]]
        %s203 = sld [smem:[#allocation7 + $0x13]]
        %s204 = sld [smem:[#allocation7 + $0x14]]
        %s205 = sld [smem:[#allocation7 + $0x15]]
        %s206 = sld [smem:[#allocation7 + $0x16]]
        %s207 = sld [smem:[#allocation7 + $0x17]]
        %s208 = sld [smem:[#allocation7 + $0x18]]
        %s209 = sld [smem:[#allocation7 + $0x19]]
        %s210 = sld [smem:[#allocation7 + $0x1a]]
        %s211 = sld [smem:[#allocation7 + $0x1b]]
        %s212 = sld [smem:[#allocation7 + $0x1c]]
        %s213 = sld [smem:[#allocation7 + $0x1d]]
        %s214 = sld [smem:[#allocation7 + $0x1e]]
        %s215 = sld [smem:[#allocation7 + $0x1f]]
        %s216 = sld [smem:[#allocation7 + $0x20]]
        %s217 = sld [smem:[#allocation7 + $0x21]]
        %s218 = sld [smem:[#allocation7 + $0x22]]
        %s219 = sld [smem:[#allocation7 + $0x23]]
        %s220 = sld [smem:[#allocation7 + $0x24]]
        %s221 = sld [smem:[#allocation7 + $0x25]]
        %s222 = sld [smem:[#allocation7 + $0x26]]
        %s223 = sld [smem:[#allocation7 + $0x27]]
        %s224 = sld [smem:[#allocation7 + $0x28]]
        %s225 = sld [smem:[#allocation7 + $0x29]]
        %s226 = sld [smem:[#allocation7 + $0x2a]]
        %s227 = sld [smem:[#allocation7 + $0x2b]]
        %s228 = sld [smem:[#allocation7 + $0x2c]]
        %s229 = sld [smem:[#allocation7 + $0x2d]]
        %s230 = sld [smem:[#allocation7 + $0x2e]]
        %s231 = sld [smem:[#allocation7 + $0x2f]]
        %s232 = sld [smem:[#allocation7 + $0x30]]
        %s233 = sld [smem:[#allocation7 + $0x31]]
        %s234 = sld [smem:[#allocation7 + $0x32]]
        %s235 = sld [smem:[#allocation7 + $0x33]]
        %s236 = sld [smem:[#allocation7 + $0x34]]
        %s237 = sld [smem:[#allocation7 + $0x35]]
        %s238 = sld [smem:[#allocation7 + $0x36]]
        %s239 = sld [smem:[#allocation7 + $0x37]]
        %s240 = sld [smem:[#allocation7 + $0x38]]
        %s241 = sld [smem:[#allocation7 + $0x39]]
        %s242 = sld [smem:[#allocation7 + $0x3a]]
        %s243 = sld [smem:[#allocation7 + $0x3b]]
        %s244 = sld [smem:[#allocation7 + $0x3c]]
        %s245 = sld [smem:[#allocation7 + $0x3d]]
        %s246 = sld [smem:[#allocation7 + $0x3e]]
        %s247 = sld [smem:[#allocation7 + $0x3f]]
        %s248 = sld [smem:[#allocation7 + $0x40]]
        %s249 = sld [smem:[#allocation7 + $0x41]]
        %s250 = sld [smem:[#allocation7 + $0x42]]
        %s251 = sld [smem:[#allocation7 + $0x43]]
        %s252 = sld [smem:[#allocation7 + $0x44]]
        %s253 = sld [smem:[#allocation7 + $0x45]]
        %s254 = sld [smem:[#allocation7 + $0x46]]
        %s255 = sld [smem:[#allocation7 + $0x47]]
        %s256 = sld [smem:[#allocation7 + $0x48]]
        %s257 = sld [smem:[#allocation7 + $0x49]]
        %s258 = sld [smem:[#allocation7 + $0x4a]]
        %s259 = sld [smem:[#allocation7 + $0x4b]]
        %s260 = sld [smem:[#allocation7 + $0x4c]]
        %s261 = sld [smem:[#allocation7 + $0x4d]]
        %s262 = sld [smem:[#allocation7 + $0x4e]]
        %s263 = sld [smem:[#allocation7 + $0x4f]]
        %s264 = sld [smem:[#allocation7 + $0x50]]
        %s265 = sld [smem:[#allocation7 + $0x51]]
        %s266 = sld [smem:[#allocation7 + $0x52]]
        %s267 = sld [smem:[#allocation7 + $0x53]]
        %s268 = sld [smem:[#allocation7 + $0x54]]
        %s269 = sld [smem:[#allocation7 + $0x55]]
        %s270 = sld [smem:[#allocation7 + $0x56]]
        %s271 = sld [smem:[#allocation7 + $0x57]]
        %s272 = sld [smem:[#allocation7 + $0x58]]
        %s273 = sld [smem:[#allocation7 + $0x59]]
        %s274 = sld [smem:[#allocation7 + $0x5a]]
        %s275 = sld [smem:[#allocation7 + $0x5b]]
        %s276 = sld [smem:[#allocation7 + $0x5c]]
        %s277 = sld [smem:[#allocation7 + $0x5d]]
        %s278 = sld [smem:[#allocation7 + $0x5e]]
        %s279 = sld [smem:[#allocation7 + $0x5f]]
        %s280 = sld [smem:[#allocation7 + $0x60]]
        %s281 = sld [smem:[#allocation7 + $0x61]]
        %v282 = vld [vmem:[%s150] sm:$0xff]
        %v283 = vld [vmem:[%s150 + $0x8] sm:$0xff]
        %s284 = scalar_lea.vmem %s150, 16 [#allocation3]
        %v285 = vld [vmem:[%s284] sm:$0xff]
        %v286 = vld [vmem:[%s284 + $0x8] sm:$0xff]
        %v287 = vadd.f32 %v282, %v285
        %v288 = vadd.f32 %v283, %v286
        %v289 = vmax.f32 %v282, %v285
        %v290 = vmax.f32 %v283, %v286
        %s291 = scalar_lea.vmem %s150, 32 [#allocation3]
        %v292 = vld [vmem:[%s291] sm:$0xff]
        %v293 = vld [vmem:[%s291 + $0x8] sm:$0xff]
        %v294 = vadd.f32 %v287, %v292
        %v295 = vadd.f32 %v288, %v293
        %v296 = vmax.f32 %v289, %v292
        %v297 = vmax.f32 %v290, %v293
        %s298 = scalar_lea.vmem %s150, 48 [#allocation3]
        %v299 = vld [vmem:[%s298] sm:$0xff]
        %v300 = vld [vmem:[%s298 + $0x8] sm:$0xff]
        %v301 = vadd.f32 %v294, %v299
        %v302 = vadd.f32 %v295, %v300
        %v303 = vmax.f32 %v296, %v299
        %v304 = vmax.f32 %v297, %v300
        %v305 = vmul.f32 %v301, 0.25
        %v306 = vmul.f32 %v302, 0.25
        %309 = vrot.lane.b32.xlu0 %v305, 3
        %v310 = vpop.permute.xlu0 %309
        %311 = vrot.lane.b32.xlu0 %v306, 3
        %v312 = vpop.permute.xlu0 %311
        %vm315 = vcmask 154648
        %316 = vst.msk [vmem:[#allocation2 + $0x3] sm:$0xff] %vm315, %v310
        %317 = vst.msk [vmem:[#allocation2 + $0xb] sm:$0xff] %vm315, %v312
        %320 = vrot.lane.b32.xlu0 %v303, 3
        %v321 = vpop.permute.xlu0 %320
        %322 = vrot.lane.b32.xlu0 %v304, 3
        %v323 = vpop.permute.xlu0 %322
        %s326 = scalar_lea.vmem [#allocation2], 24
        %327 = vst.msk [vmem:[%s326 + $0x3] sm:$0xff] %vm315, %v321
        %328 = vst.msk [vmem:[%s326 + $0xb] sm:$0xff] %vm315, %v323
        %v329 = vld [vmem:[#allocation2] sm:$0xff]
        %v330 = vld [vmem:[#allocation2 + $0x8] sm:$0xff]
        %v331 = vstv %s184
        %v332 = vmul.f32 %v331, %v329
        %v333 = vmul.f32 %v331, %v330
        %v334 = vadd.f32 %v332, 0.0
        %v335 = vadd.f32 %v333, 0.0
        %v336 = vstv %s185
        %v337 = vmul.f32 %v336, %v329
        %v338 = vmul.f32 %v336, %v330
        %341 = vrot.lane.b32.xlu0 %v337, 127
        %v342 = vpop.permute.xlu0 %341
        %343 = vrot.lane.b32.xlu0 %v338, 127
        %v344 = vpop.permute.xlu0 %343
        %v347 = vadd.f32 %v334, %v342
        %v348 = vadd.f32 %v335, %v344
        %v349 = vstv %s186
        %v350 = vmul.f32 %v349, %v329
        %v351 = vmul.f32 %v349, %v330
        %354 = vrot.lane.b32.xlu0 %v350, 126
        %v355 = vpop.permute.xlu0 %354
        %356 = vrot.lane.b32.xlu0 %v351, 126
        %v357 = vpop.permute.xlu0 %356
        %v360 = vadd.f32 %v347, %v355
        %v361 = vadd.f32 %v348, %v357
        %v362 = vstv %s187
        %v363 = vmul.f32 %v362, %v329
        %v364 = vmul.f32 %v362, %v330
        %367 = vrot.lane.b32.xlu0 %v363, 125
        %v368 = vpop.permute.xlu0 %367
        %369 = vrot.lane.b32.xlu0 %v364, 125
        %v370 = vpop.permute.xlu0 %369
        %v373 = vadd.f32 %v360, %v368
        %v374 = vadd.f32 %v361, %v370
        %v375 = vstv %s188
        %v376 = vmul.f32 %v375, %v329
        %v377 = vmul.f32 %v375, %v330
        %380 = vrot.lane.b32.xlu0 %v376, 124
        %v381 = vpop.permute.xlu0 %380
        %382 = vrot.lane.b32.xlu0 %v377, 124
        %v383 = vpop.permute.xlu0 %382
        %v386 = vadd.f32 %v373, %v381
        %v387 = vadd.f32 %v374, %v383
        %v388 = vstv %s189
        %v389 = vmul.f32 %v388, %v329
        %v390 = vmul.f32 %v388, %v330
        %393 = vrot.lane.b32.xlu0 %v389, 123
        %v394 = vpop.permute.xlu0 %393
        %395 = vrot.lane.b32.xlu0 %v390, 123
        %v396 = vpop.permute.xlu0 %395
        %v399 = vadd.f32 %v386, %v394
        %v400 = vadd.f32 %v387, %v396
        %v401 = vstv %s190
        %v402 = vmul.f32 %v401, %v329
        %v403 = vmul.f32 %v401, %v330
        %406 = vrot.lane.b32.xlu0 %v402, 122
        %v407 = vpop.permute.xlu0 %406
        %408 = vrot.lane.b32.xlu0 %v403, 122
        %v409 = vpop.permute.xlu0 %408
        %v412 = vadd.f32 %v399, %v407
        %v413 = vadd.f32 %v400, %v409
        %v414 = vld [vmem:[#allocation2 + $0x1] sm:$0xff]
        %v415 = vld [vmem:[#allocation2 + $0x9] sm:$0xff]
        %v416 = vstv %s191
        %v417 = vmul.f32 %v416, %v414
        %v418 = vmul.f32 %v416, %v415
        %v419 = vadd.f32 %v412, %v417
        %v420 = vadd.f32 %v413, %v418
        %v421 = vstv %s192
        %v422 = vmul.f32 %v421, %v414
        %v423 = vmul.f32 %v421, %v415
        %426 = vrot.lane.b32.xlu0 %v422, 127
        %v427 = vpop.permute.xlu0 %426
        %428 = vrot.lane.b32.xlu0 %v423, 127
        %v429 = vpop.permute.xlu0 %428
        %v432 = vadd.f32 %v419, %v427
        %v433 = vadd.f32 %v420, %v429
        %v434 = vstv %s193
        %v435 = vmul.f32 %v434, %v414
        %v436 = vmul.f32 %v434, %v415
        %439 = vrot.lane.b32.xlu0 %v435, 126
        %v440 = vpop.permute.xlu0 %439
        %441 = vrot.lane.b32.xlu0 %v436, 126
        %v442 = vpop.permute.xlu0 %441
        %v445 = vadd.f32 %v432, %v440
        %v446 = vadd.f32 %v433, %v442
        %v447 = vstv %s194
        %v448 = vmul.f32 %v447, %v414
        %v449 = vmul.f32 %v447, %v415
        %452 = vrot.lane.b32.xlu0 %v448, 125
        %v453 = vpop.permute.xlu0 %452
        %454 = vrot.lane.b32.xlu0 %v449, 125
        %v455 = vpop.permute.xlu0 %454
        %v458 = vadd.f32 %v445, %v453
        %v459 = vadd.f32 %v446, %v455
        %v460 = vstv %s195
        %v461 = vmul.f32 %v460, %v414
        %v462 = vmul.f32 %v460, %v415
        %465 = vrot.lane.b32.xlu0 %v461, 124
        %v466 = vpop.permute.xlu0 %465
        %467 = vrot.lane.b32.xlu0 %v462, 124
        %v468 = vpop.permute.xlu0 %467
        %v471 = vadd.f32 %v458, %v466
        %v472 = vadd.f32 %v459, %v468
        %v473 = vstv %s196
        %v474 = vmul.f32 %v473, %v414
        %v475 = vmul.f32 %v473, %v415
        %478 = vrot.lane.b32.xlu0 %v474, 123
        %v479 = vpop.permute.xlu0 %478
        %480 = vrot.lane.b32.xlu0 %v475, 123
        %v481 = vpop.permute.xlu0 %480
        %v484 = vadd.f32 %v471, %v479
        %v485 = vadd.f32 %v472, %v481
        %v486 = vstv %s197
        %v487 = vmul.f32 %v486, %v414
        %v488 = vmul.f32 %v486, %v415
        %491 = vrot.lane.b32.xlu0 %v487, 122
        %v492 = vpop.permute.xlu0 %491
        %493 = vrot.lane.b32.xlu0 %v488, 122
        %v494 = vpop.permute.xlu0 %493
        %v497 = vadd.f32 %v484, %v492
        %v498 = vadd.f32 %v485, %v494
        %v499 = vld [vmem:[#allocation2 + $0x2] sm:$0xff]
        %v500 = vld [vmem:[#allocation2 + $0xa] sm:$0xff]
        %v501 = vstv %s198
        %v502 = vmul.f32 %v501, %v499
        %v503 = vmul.f32 %v501, %v500
        %v504 = vadd.f32 %v497, %v502
        %v505 = vadd.f32 %v498, %v503
        %v506 = vstv %s199
        %v507 = vmul.f32 %v506, %v499
        %v508 = vmul.f32 %v506, %v500
        %511 = vrot.lane.b32.xlu0 %v507, 127
        %v512 = vpop.permute.xlu0 %511
        %513 = vrot.lane.b32.xlu0 %v508, 127
        %v514 = vpop.permute.xlu0 %513
        %v517 = vadd.f32 %v504, %v512
        %v518 = vadd.f32 %v505, %v514
        %v519 = vstv %s200
        %v520 = vmul.f32 %v519, %v499
        %v521 = vmul.f32 %v519, %v500
        %524 = vrot.lane.b32.xlu0 %v520, 126
        %v525 = vpop.permute.xlu0 %524
        %526 = vrot.lane.b32.xlu0 %v521, 126
        %v527 = vpop.permute.xlu0 %526
        %v530 = vadd.f32 %v517, %v525
        %v531 = vadd.f32 %v518, %v527
        %v532 = vstv %s201
        %v533 = vmul.f32 %v532, %v499
        %v534 = vmul.f32 %v532, %v500
        %537 = vrot.lane.b32.xlu0 %v533, 125
        %v538 = vpop.permute.xlu0 %537
        %539 = vrot.lane.b32.xlu0 %v534, 125
        %v540 = vpop.permute.xlu0 %539
        %v543 = vadd.f32 %v530, %v538
        %v544 = vadd.f32 %v531, %v540
        %v545 = vstv %s202
        %v546 = vmul.f32 %v545, %v499
        %v547 = vmul.f32 %v545, %v500
        %550 = vrot.lane.b32.xlu0 %v546, 124
        %v551 = vpop.permute.xlu0 %550
        %552 = vrot.lane.b32.xlu0 %v547, 124
        %v553 = vpop.permute.xlu0 %552
        %v556 = vadd.f32 %v543, %v551
        %v557 = vadd.f32 %v544, %v553
        %v558 = vstv %s203
        %v559 = vmul.f32 %v558, %v499
        %v560 = vmul.f32 %v558, %v500
        %563 = vrot.lane.b32.xlu0 %v559, 123
        %v564 = vpop.permute.xlu0 %563
        %565 = vrot.lane.b32.xlu0 %v560, 123
        %v566 = vpop.permute.xlu0 %565
        %v569 = vadd.f32 %v556, %v564
        %v570 = vadd.f32 %v557, %v566
        %v571 = vstv %s204
        %v572 = vmul.f32 %v571, %v499
        %v573 = vmul.f32 %v571, %v500
        %576 = vrot.lane.b32.xlu0 %v572, 122
        %v577 = vpop.permute.xlu0 %576
        %578 = vrot.lane.b32.xlu0 %v573, 122
        %v579 = vpop.permute.xlu0 %578
        %v582 = vadd.f32 %v569, %v577
        %v583 = vadd.f32 %v570, %v579
        %v584 = vld [vmem:[#allocation2 + $0x3] sm:$0xff]
        %v585 = vld [vmem:[#allocation2 + $0xb] sm:$0xff]
        %v586 = vstv %s205
        %v587 = vmul.f32 %v586, %v584
        %v588 = vmul.f32 %v586, %v585
        %v589 = vadd.f32 %v582, %v587
        %v590 = vadd.f32 %v583, %v588
        %v591 = vstv %s206
        %v592 = vmul.f32 %v591, %v584
        %v593 = vmul.f32 %v591, %v585
        %596 = vrot.lane.b32.xlu0 %v592, 127
        %v597 = vpop.permute.xlu0 %596
        %598 = vrot.lane.b32.xlu0 %v593, 127
        %v599 = vpop.permute.xlu0 %598
        %v602 = vadd.f32 %v589, %v597
        %v603 = vadd.f32 %v590, %v599
        %v604 = vstv %s207
        %v605 = vmul.f32 %v604, %v584
        %v606 = vmul.f32 %v604, %v585
        %609 = vrot.lane.b32.xlu0 %v605, 126
        %v610 = vpop.permute.xlu0 %609
        %611 = vrot.lane.b32.xlu0 %v606, 126
        %v612 = vpop.permute.xlu0 %611
        %v615 = vadd.f32 %v602, %v610
        %v616 = vadd.f32 %v603, %v612
        %v617 = vstv %s208
        %v618 = vmul.f32 %v617, %v584
        %v619 = vmul.f32 %v617, %v585
        %622 = vrot.lane.b32.xlu0 %v618, 125
        %v623 = vpop.permute.xlu0 %622
        %624 = vrot.lane.b32.xlu0 %v619, 125
        %v625 = vpop.permute.xlu0 %624
        %v628 = vadd.f32 %v615, %v623
        %v629 = vadd.f32 %v616, %v625
        %v630 = vstv %s209
        %v631 = vmul.f32 %v630, %v584
        %v632 = vmul.f32 %v630, %v585
        %635 = vrot.lane.b32.xlu0 %v631, 124
        %v636 = vpop.permute.xlu0 %635
        %637 = vrot.lane.b32.xlu0 %v632, 124
        %v638 = vpop.permute.xlu0 %637
        %v641 = vadd.f32 %v628, %v636
        %v642 = vadd.f32 %v629, %v638
        %v643 = vstv %s210
        %v644 = vmul.f32 %v643, %v584
        %v645 = vmul.f32 %v643, %v585
        %648 = vrot.lane.b32.xlu0 %v644, 123
        %v649 = vpop.permute.xlu0 %648
        %650 = vrot.lane.b32.xlu0 %v645, 123
        %v651 = vpop.permute.xlu0 %650
        %v654 = vadd.f32 %v641, %v649
        %v655 = vadd.f32 %v642, %v651
        %v656 = vstv %s211
        %v657 = vmul.f32 %v656, %v584
        %v658 = vmul.f32 %v656, %v585
        %661 = vrot.lane.b32.xlu0 %v657, 122
        %v662 = vpop.permute.xlu0 %661
        %663 = vrot.lane.b32.xlu0 %v658, 122
        %v664 = vpop.permute.xlu0 %663
        %v667 = vadd.f32 %v654, %v662
        %v668 = vadd.f32 %v655, %v664
        %v669 = vld [vmem:[#allocation2 + $0x4] sm:$0xff]
        %v670 = vld [vmem:[#allocation2 + $0xc] sm:$0xff]
        %v671 = vstv %s212
        %v672 = vmul.f32 %v671, %v669
        %v673 = vmul.f32 %v671, %v670
        %v674 = vadd.f32 %v667, %v672
        %v675 = vadd.f32 %v668, %v673
        %v676 = vstv %s213
        %v677 = vmul.f32 %v676, %v669
        %v678 = vmul.f32 %v676, %v670
        %681 = vrot.lane.b32.xlu0 %v677, 127
        %v682 = vpop.permute.xlu0 %681
        %683 = vrot.lane.b32.xlu0 %v678, 127
        %v684 = vpop.permute.xlu0 %683
        %v687 = vadd.f32 %v674, %v682
        %v688 = vadd.f32 %v675, %v684
        %v689 = vstv %s214
        %v690 = vmul.f32 %v689, %v669
        %v691 = vmul.f32 %v689, %v670
        %694 = vrot.lane.b32.xlu0 %v690, 126
        %v695 = vpop.permute.xlu0 %694
        %696 = vrot.lane.b32.xlu0 %v691, 126
        %v697 = vpop.permute.xlu0 %696
        %v700 = vadd.f32 %v687, %v695
        %v701 = vadd.f32 %v688, %v697
        %v702 = vstv %s215
        %v703 = vmul.f32 %v702, %v669
        %v704 = vmul.f32 %v702, %v670
        %707 = vrot.lane.b32.xlu0 %v703, 125
        %v708 = vpop.permute.xlu0 %707
        %709 = vrot.lane.b32.xlu0 %v704, 125
        %v710 = vpop.permute.xlu0 %709
        %v713 = vadd.f32 %v700, %v708
        %v714 = vadd.f32 %v701, %v710
        %v715 = vstv %s216
        %v716 = vmul.f32 %v715, %v669
        %v717 = vmul.f32 %v715, %v670
        %720 = vrot.lane.b32.xlu0 %v716, 124
        %v721 = vpop.permute.xlu0 %720
        %722 = vrot.lane.b32.xlu0 %v717, 124
        %v723 = vpop.permute.xlu0 %722
        %v726 = vadd.f32 %v713, %v721
        %v727 = vadd.f32 %v714, %v723
        %v728 = vstv %s217
        %v729 = vmul.f32 %v728, %v669
        %v730 = vmul.f32 %v728, %v670
        %733 = vrot.lane.b32.xlu0 %v729, 123
        %v734 = vpop.permute.xlu0 %733
        %735 = vrot.lane.b32.xlu0 %v730, 123
        %v736 = vpop.permute.xlu0 %735
        %v739 = vadd.f32 %v726, %v734
        %v740 = vadd.f32 %v727, %v736
        %v741 = vstv %s218
        %v742 = vmul.f32 %v741, %v669
        %v743 = vmul.f32 %v741, %v670
        %746 = vrot.lane.b32.xlu0 %v742, 122
        %v747 = vpop.permute.xlu0 %746
        %748 = vrot.lane.b32.xlu0 %v743, 122
        %v749 = vpop.permute.xlu0 %748
        %v752 = vadd.f32 %v739, %v747
        %v753 = vadd.f32 %v740, %v749
        %v754 = vld [vmem:[#allocation2 + $0x5] sm:$0xff]
        %v755 = vld [vmem:[#allocation2 + $0xd] sm:$0xff]
        %v756 = vstv %s219
        %v757 = vmul.f32 %v756, %v754
        %v758 = vmul.f32 %v756, %v755
        %v759 = vadd.f32 %v752, %v757
        %v760 = vadd.f32 %v753, %v758
        %v761 = vstv %s220
        %v762 = vmul.f32 %v761, %v754
        %v763 = vmul.f32 %v761, %v755
        %766 = vrot.lane.b32.xlu0 %v762, 127
        %v767 = vpop.permute.xlu0 %766
        %768 = vrot.lane.b32.xlu0 %v763, 127
        %v769 = vpop.permute.xlu0 %768
        %v772 = vadd.f32 %v759, %v767
        %v773 = vadd.f32 %v760, %v769
        %v774 = vstv %s221
        %v775 = vmul.f32 %v774, %v754
        %v776 = vmul.f32 %v774, %v755
        %779 = vrot.lane.b32.xlu0 %v775, 126
        %v780 = vpop.permute.xlu0 %779
        %781 = vrot.lane.b32.xlu0 %v776, 126
        %v782 = vpop.permute.xlu0 %781
        %v785 = vadd.f32 %v772, %v780
        %v786 = vadd.f32 %v773, %v782
        %v787 = vstv %s222
        %v788 = vmul.f32 %v787, %v754
        %v789 = vmul.f32 %v787, %v755
        %792 = vrot.lane.b32.xlu0 %v788, 125
        %v793 = vpop.permute.xlu0 %792
        %794 = vrot.lane.b32.xlu0 %v789, 125
        %v795 = vpop.permute.xlu0 %794
        %v798 = vadd.f32 %v785, %v793
        %v799 = vadd.f32 %v786, %v795
        %v800 = vstv %s223
        %v801 = vmul.f32 %v800, %v754
        %v802 = vmul.f32 %v800, %v755
        %805 = vrot.lane.b32.xlu0 %v801, 124
        %v806 = vpop.permute.xlu0 %805
        %807 = vrot.lane.b32.xlu0 %v802, 124
        %v808 = vpop.permute.xlu0 %807
        %v811 = vadd.f32 %v798, %v806
        %v812 = vadd.f32 %v799, %v808
        %v813 = vstv %s224
        %v814 = vmul.f32 %v813, %v754
        %v815 = vmul.f32 %v813, %v755
        %818 = vrot.lane.b32.xlu0 %v814, 123
        %v819 = vpop.permute.xlu0 %818
        %820 = vrot.lane.b32.xlu0 %v815, 123
        %v821 = vpop.permute.xlu0 %820
        %v824 = vadd.f32 %v811, %v819
        %v825 = vadd.f32 %v812, %v821
        %v826 = vstv %s225
        %v827 = vmul.f32 %v826, %v754
        %v828 = vmul.f32 %v826, %v755
        %831 = vrot.lane.b32.xlu0 %v827, 122
        %v832 = vpop.permute.xlu0 %831
        %833 = vrot.lane.b32.xlu0 %v828, 122
        %v834 = vpop.permute.xlu0 %833
        %v837 = vadd.f32 %v824, %v832
        %v838 = vadd.f32 %v825, %v834
        %v839 = vld [vmem:[#allocation2 + $0x6] sm:$0xff]
        %v840 = vld [vmem:[#allocation2 + $0xe] sm:$0xff]
        %v841 = vstv %s226
        %v842 = vmul.f32 %v841, %v839
        %v843 = vmul.f32 %v841, %v840
        %v844 = vadd.f32 %v837, %v842
        %v845 = vadd.f32 %v838, %v843
        %v846 = vstv %s227
        %v847 = vmul.f32 %v846, %v839
        %v848 = vmul.f32 %v846, %v840
        %851 = vrot.lane.b32.xlu0 %v847, 127
        %v852 = vpop.permute.xlu0 %851
        %853 = vrot.lane.b32.xlu0 %v848, 127
        %v854 = vpop.permute.xlu0 %853
        %v857 = vadd.f32 %v844, %v852
        %v858 = vadd.f32 %v845, %v854
        %v859 = vstv %s228
        %v860 = vmul.f32 %v859, %v839
        %v861 = vmul.f32 %v859, %v840
        %864 = vrot.lane.b32.xlu0 %v860, 126
        %v865 = vpop.permute.xlu0 %864
        %866 = vrot.lane.b32.xlu0 %v861, 126
        %v867 = vpop.permute.xlu0 %866
        %v870 = vadd.f32 %v857, %v865
        %v871 = vadd.f32 %v858, %v867
        %v872 = vstv %s229
        %v873 = vmul.f32 %v872, %v839
        %v874 = vmul.f32 %v872, %v840
        %877 = vrot.lane.b32.xlu0 %v873, 125
        %v878 = vpop.permute.xlu0 %877
        %879 = vrot.lane.b32.xlu0 %v874, 125
        %v880 = vpop.permute.xlu0 %879
        %v883 = vadd.f32 %v870, %v878
        %v884 = vadd.f32 %v871, %v880
        %v885 = vstv %s230
        %v886 = vmul.f32 %v885, %v839
        %v887 = vmul.f32 %v885, %v840
        %890 = vrot.lane.b32.xlu0 %v886, 124
        %v891 = vpop.permute.xlu0 %890
        %892 = vrot.lane.b32.xlu0 %v887, 124
        %v893 = vpop.permute.xlu0 %892
        %v896 = vadd.f32 %v883, %v891
        %v897 = vadd.f32 %v884, %v893
        %v898 = vstv %s231
        %v899 = vmul.f32 %v898, %v839
        %v900 = vmul.f32 %v898, %v840
        %903 = vrot.lane.b32.xlu0 %v899, 123
        %v904 = vpop.permute.xlu0 %903
        %905 = vrot.lane.b32.xlu0 %v900, 123
        %v906 = vpop.permute.xlu0 %905
        %v909 = vadd.f32 %v896, %v904
        %v910 = vadd.f32 %v897, %v906
        %v911 = vstv %s232
        %v912 = vmul.f32 %v911, %v839
        %v913 = vmul.f32 %v911, %v840
        %916 = vrot.lane.b32.xlu0 %v912, 122
        %v917 = vpop.permute.xlu0 %916
        %918 = vrot.lane.b32.xlu0 %v913, 122
        %v919 = vpop.permute.xlu0 %918
        %v922 = vadd.f32 %v909, %v917
        %v923 = vadd.f32 %v910, %v919
        %v924 = vld [vmem:[%s326] sm:$0xff]
        %v925 = vld [vmem:[%s326 + $0x8] sm:$0xff]
        %v926 = vstv %s233
        %v927 = vmul.f32 %v926, %v924
        %v928 = vmul.f32 %v926, %v925
        %v929 = vadd.f32 %v922, %v927
        %v930 = vadd.f32 %v923, %v928
        %v931 = vstv %s234
        %v932 = vmul.f32 %v931, %v924
        %v933 = vmul.f32 %v931, %v925
        %936 = vrot.lane.b32.xlu0 %v932, 127
        %v937 = vpop.permute.xlu0 %936
        %938 = vrot.lane.b32.xlu0 %v933, 127
        %v939 = vpop.permute.xlu0 %938
        %v942 = vadd.f32 %v929, %v937
        %v943 = vadd.f32 %v930, %v939
        %v944 = vstv %s235
        %v945 = vmul.f32 %v944, %v924
        %v946 = vmul.f32 %v944, %v925
        %949 = vrot.lane.b32.xlu0 %v945, 126
        %v950 = vpop.permute.xlu0 %949
        %951 = vrot.lane.b32.xlu0 %v946, 126
        %v952 = vpop.permute.xlu0 %951
        %v955 = vadd.f32 %v942, %v950
        %v956 = vadd.f32 %v943, %v952
        %v957 = vstv %s236
        %v958 = vmul.f32 %v957, %v924
        %v959 = vmul.f32 %v957, %v925
        %962 = vrot.lane.b32.xlu0 %v958, 125
        %v963 = vpop.permute.xlu0 %962
        %964 = vrot.lane.b32.xlu0 %v959, 125
        %v965 = vpop.permute.xlu0 %964
        %v968 = vadd.f32 %v955, %v963
        %v969 = vadd.f32 %v956, %v965
        %v970 = vstv %s237
        %v971 = vmul.f32 %v970, %v924
        %v972 = vmul.f32 %v970, %v925
        %975 = vrot.lane.b32.xlu0 %v971, 124
        %v976 = vpop.permute.xlu0 %975
        %977 = vrot.lane.b32.xlu0 %v972, 124
        %v978 = vpop.permute.xlu0 %977
        %v981 = vadd.f32 %v968, %v976
        %v982 = vadd.f32 %v969, %v978
        %v983 = vstv %s238
        %v984 = vmul.f32 %v983, %v924
        %v985 = vmul.f32 %v983, %v925
        %988 = vrot.lane.b32.xlu0 %v984, 123
        %v989 = vpop.permute.xlu0 %988
        %990 = vrot.lane.b32.xlu0 %v985, 123
        %v991 = vpop.permute.xlu0 %990
        %v994 = vadd.f32 %v981, %v989
        %v995 = vadd.f32 %v982, %v991
        %v996 = vstv %s239
        %v997 = vmul.f32 %v996, %v924
        %v998 = vmul.f32 %v996, %v925
        %1001 = vrot.lane.b32.xlu0 %v997, 122
        %v1002 = vpop.permute.xlu0 %1001
        %1003 = vrot.lane.b32.xlu0 %v998, 122
        %v1004 = vpop.permute.xlu0 %1003
        %v1007 = vadd.f32 %v994, %v1002
        %v1008 = vadd.f32 %v995, %v1004
        %v1009 = vld [vmem:[%s326 + $0x1] sm:$0xff]
        %v1010 = vld [vmem:[%s326 + $0x9] sm:$0xff]
        %v1011 = vstv %s240
        %v1012 = vmul.f32 %v1011, %v1009
        %v1013 = vmul.f32 %v1011, %v1010
        %v1014 = vadd.f32 %v1007, %v1012
        %v1015 = vadd.f32 %v1008, %v1013
        %v1016 = vstv %s241
        %v1017 = vmul.f32 %v1016, %v1009
        %v1018 = vmul.f32 %v1016, %v1010
        %1021 = vrot.lane.b32.xlu0 %v1017, 127
        %v1022 = vpop.permute.xlu0 %1021
        %1023 = vrot.lane.b32.xlu0 %v1018, 127
        %v1024 = vpop.permute.xlu0 %1023
        %v1027 = vadd.f32 %v1014, %v1022
        %v1028 = vadd.f32 %v1015, %v1024
        %v1029 = vstv %s242
        %v1030 = vmul.f32 %v1029, %v1009
        %v1031 = vmul.f32 %v1029, %v1010
        %1034 = vrot.lane.b32.xlu0 %v1030, 126
        %v1035 = vpop.permute.xlu0 %1034
        %1036 = vrot.lane.b32.xlu0 %v1031, 126
        %v1037 = vpop.permute.xlu0 %1036
        %v1040 = vadd.f32 %v1027, %v1035
        %v1041 = vadd.f32 %v1028, %v1037
        %v1042 = vstv %s243
        %v1043 = vmul.f32 %v1042, %v1009
        %v1044 = vmul.f32 %v1042, %v1010
        %1047 = vrot.lane.b32.xlu0 %v1043, 125
        %v1048 = vpop.permute.xlu0 %1047
        %1049 = vrot.lane.b32.xlu0 %v1044, 125
        %v1050 = vpop.permute.xlu0 %1049
        %v1053 = vadd.f32 %v1040, %v1048
        %v1054 = vadd.f32 %v1041, %v1050
        %v1055 = vstv %s244
        %v1056 = vmul.f32 %v1055, %v1009
        %v1057 = vmul.f32 %v1055, %v1010
        %1060 = vrot.lane.b32.xlu0 %v1056, 124
        %v1061 = vpop.permute.xlu0 %1060
        %1062 = vrot.lane.b32.xlu0 %v1057, 124
        %v1063 = vpop.permute.xlu0 %1062
        %v1066 = vadd.f32 %v1053, %v1061
        %v1067 = vadd.f32 %v1054, %v1063
        %v1068 = vstv %s245
        %v1069 = vmul.f32 %v1068, %v1009
        %v1070 = vmul.f32 %v1068, %v1010
        %1073 = vrot.lane.b32.xlu0 %v1069, 123
        %v1074 = vpop.permute.xlu0 %1073
        %1075 = vrot.lane.b32.xlu0 %v1070, 123
        %v1076 = vpop.permute.xlu0 %1075
        %v1079 = vadd.f32 %v1066, %v1074
        %v1080 = vadd.f32 %v1067, %v1076
        %v1081 = vstv %s246
        %v1082 = vmul.f32 %v1081, %v1009
        %v1083 = vmul.f32 %v1081, %v1010
        %1086 = vrot.lane.b32.xlu0 %v1082, 122
        %v1087 = vpop.permute.xlu0 %1086
        %1088 = vrot.lane.b32.xlu0 %v1083, 122
        %v1089 = vpop.permute.xlu0 %1088
        %v1092 = vadd.f32 %v1079, %v1087
        %v1093 = vadd.f32 %v1080, %v1089
        %v1094 = vld [vmem:[%s326 + $0x2] sm:$0xff]
        %v1095 = vld [vmem:[%s326 + $0xa] sm:$0xff]
        %v1096 = vstv %s247
        %v1097 = vmul.f32 %v1096, %v1094
        %v1098 = vmul.f32 %v1096, %v1095
        %v1099 = vadd.f32 %v1092, %v1097
        %v1100 = vadd.f32 %v1093, %v1098
        %v1101 = vstv %s248
        %v1102 = vmul.f32 %v1101, %v1094
        %v1103 = vmul.f32 %v1101, %v1095
        %1106 = vrot.lane.b32.xlu0 %v1102, 127
        %v1107 = vpop.permute.xlu0 %1106
        %1108 = vrot.lane.b32.xlu0 %v1103, 127
        %v1109 = vpop.permute.xlu0 %1108
        %v1112 = vadd.f32 %v1099, %v1107
        %v1113 = vadd.f32 %v1100, %v1109
        %v1114 = vstv %s249
        %v1115 = vmul.f32 %v1114, %v1094
        %v1116 = vmul.f32 %v1114, %v1095
        %1119 = vrot.lane.b32.xlu0 %v1115, 126
        %v1120 = vpop.permute.xlu0 %1119
        %1121 = vrot.lane.b32.xlu0 %v1116, 126
        %v1122 = vpop.permute.xlu0 %1121
        %v1125 = vadd.f32 %v1112, %v1120
        %v1126 = vadd.f32 %v1113, %v1122
        %v1127 = vstv %s250
        %v1128 = vmul.f32 %v1127, %v1094
        %v1129 = vmul.f32 %v1127, %v1095
        %1132 = vrot.lane.b32.xlu0 %v1128, 125
        %v1133 = vpop.permute.xlu0 %1132
        %1134 = vrot.lane.b32.xlu0 %v1129, 125
        %v1135 = vpop.permute.xlu0 %1134
        %v1138 = vadd.f32 %v1125, %v1133
        %v1139 = vadd.f32 %v1126, %v1135
        %v1140 = vstv %s251
        %v1141 = vmul.f32 %v1140, %v1094
        %v1142 = vmul.f32 %v1140, %v1095
        %1145 = vrot.lane.b32.xlu0 %v1141, 124
        %v1146 = vpop.permute.xlu0 %1145
        %1147 = vrot.lane.b32.xlu0 %v1142, 124
        %v1148 = vpop.permute.xlu0 %1147
        %v1151 = vadd.f32 %v1138, %v1146
        %v1152 = vadd.f32 %v1139, %v1148
        %v1153 = vstv %s252
        %v1154 = vmul.f32 %v1153, %v1094
        %v1155 = vmul.f32 %v1153, %v1095
        %1158 = vrot.lane.b32.xlu0 %v1154, 123
        %v1159 = vpop.permute.xlu0 %1158
        %1160 = vrot.lane.b32.xlu0 %v1155, 123
        %v1161 = vpop.permute.xlu0 %1160
        %v1164 = vadd.f32 %v1151, %v1159
        %v1165 = vadd.f32 %v1152, %v1161
        %v1166 = vstv %s253
        %v1167 = vmul.f32 %v1166, %v1094
        %v1168 = vmul.f32 %v1166, %v1095
        %1171 = vrot.lane.b32.xlu0 %v1167, 122
        %v1172 = vpop.permute.xlu0 %1171
        %1173 = vrot.lane.b32.xlu0 %v1168, 122
        %v1174 = vpop.permute.xlu0 %1173
        %v1177 = vadd.f32 %v1164, %v1172
        %v1178 = vadd.f32 %v1165, %v1174
        %v1179 = vld [vmem:[%s326 + $0x3] sm:$0xff]
        %v1180 = vld [vmem:[%s326 + $0xb] sm:$0xff]
        %v1181 = vstv %s254
        %v1182 = vmul.f32 %v1181, %v1179
        %v1183 = vmul.f32 %v1181, %v1180
        %v1184 = vadd.f32 %v1177, %v1182
        %v1185 = vadd.f32 %v1178, %v1183
        %v1186 = vstv %s255
        %v1187 = vmul.f32 %v1186, %v1179
        %v1188 = vmul.f32 %v1186, %v1180
        %1191 = vrot.lane.b32.xlu0 %v1187, 127
        %v1192 = vpop.permute.xlu0 %1191
        %1193 = vrot.lane.b32.xlu0 %v1188, 127
        %v1194 = vpop.permute.xlu0 %1193
        %v1197 = vadd.f32 %v1184, %v1192
        %v1198 = vadd.f32 %v1185, %v1194
        %v1199 = vstv %s256
        %v1200 = vmul.f32 %v1199, %v1179
        %v1201 = vmul.f32 %v1199, %v1180
        %1204 = vrot.lane.b32.xlu0 %v1200, 126
        %v1205 = vpop.permute.xlu0 %1204
        %1206 = vrot.lane.b32.xlu0 %v1201, 126
        %v1207 = vpop.permute.xlu0 %1206
        %v1210 = vadd.f32 %v1197, %v1205
        %v1211 = vadd.f32 %v1198, %v1207
        %v1212 = vstv %s257
        %v1213 = vmul.f32 %v1212, %v1179
        %v1214 = vmul.f32 %v1212, %v1180
        %1217 = vrot.lane.b32.xlu0 %v1213, 125
        %v1218 = vpop.permute.xlu0 %1217
        %1219 = vrot.lane.b32.xlu0 %v1214, 125
        %v1220 = vpop.permute.xlu0 %1219
        %v1223 = vadd.f32 %v1210, %v1218
        %v1224 = vadd.f32 %v1211, %v1220
        %v1225 = vstv %s258
        %v1226 = vmul.f32 %v1225, %v1179
        %v1227 = vmul.f32 %v1225, %v1180
        %1230 = vrot.lane.b32.xlu0 %v1226, 124
        %v1231 = vpop.permute.xlu0 %1230
        %1232 = vrot.lane.b32.xlu0 %v1227, 124
        %v1233 = vpop.permute.xlu0 %1232
        %v1236 = vadd.f32 %v1223, %v1231
        %v1237 = vadd.f32 %v1224, %v1233
        %v1238 = vstv %s259
        %v1239 = vmul.f32 %v1238, %v1179
        %v1240 = vmul.f32 %v1238, %v1180
        %1243 = vrot.lane.b32.xlu0 %v1239, 123
        %v1244 = vpop.permute.xlu0 %1243
        %1245 = vrot.lane.b32.xlu0 %v1240, 123
        %v1246 = vpop.permute.xlu0 %1245
        %v1249 = vadd.f32 %v1236, %v1244
        %v1250 = vadd.f32 %v1237, %v1246
        %v1251 = vstv %s260
        %v1252 = vmul.f32 %v1251, %v1179
        %v1253 = vmul.f32 %v1251, %v1180
        %1256 = vrot.lane.b32.xlu0 %v1252, 122
        %v1257 = vpop.permute.xlu0 %1256
        %1258 = vrot.lane.b32.xlu0 %v1253, 122
        %v1259 = vpop.permute.xlu0 %1258
        %v1262 = vadd.f32 %v1249, %v1257
        %v1263 = vadd.f32 %v1250, %v1259
        %v1264 = vld [vmem:[%s326 + $0x4] sm:$0xff]
        %v1265 = vld [vmem:[%s326 + $0xc] sm:$0xff]
        %v1266 = vstv %s261
        %v1267 = vmul.f32 %v1266, %v1264
        %v1268 = vmul.f32 %v1266, %v1265
        %v1269 = vadd.f32 %v1262, %v1267
        %v1270 = vadd.f32 %v1263, %v1268
        %v1271 = vstv %s262
        %v1272 = vmul.f32 %v1271, %v1264
        %v1273 = vmul.f32 %v1271, %v1265
        %1276 = vrot.lane.b32.xlu0 %v1272, 127
        %v1277 = vpop.permute.xlu0 %1276
        %1278 = vrot.lane.b32.xlu0 %v1273, 127
        %v1279 = vpop.permute.xlu0 %1278
        %v1282 = vadd.f32 %v1269, %v1277
        %v1283 = vadd.f32 %v1270, %v1279
        %v1284 = vstv %s263
        %v1285 = vmul.f32 %v1284, %v1264
        %v1286 = vmul.f32 %v1284, %v1265
        %1289 = vrot.lane.b32.xlu0 %v1285, 126
        %v1290 = vpop.permute.xlu0 %1289
        %1291 = vrot.lane.b32.xlu0 %v1286, 126
        %v1292 = vpop.permute.xlu0 %1291
        %v1295 = vadd.f32 %v1282, %v1290
        %v1296 = vadd.f32 %v1283, %v1292
        %v1297 = vstv %s264
        %v1298 = vmul.f32 %v1297, %v1264
        %v1299 = vmul.f32 %v1297, %v1265
        %1302 = vrot.lane.b32.xlu0 %v1298, 125
        %v1303 = vpop.permute.xlu0 %1302
        %1304 = vrot.lane.b32.xlu0 %v1299, 125
        %v1305 = vpop.permute.xlu0 %1304
        %v1308 = vadd.f32 %v1295, %v1303
        %v1309 = vadd.f32 %v1296, %v1305
        %v1310 = vstv %s265
        %v1311 = vmul.f32 %v1310, %v1264
        %v1312 = vmul.f32 %v1310, %v1265
        %1315 = vrot.lane.b32.xlu0 %v1311, 124
        %v1316 = vpop.permute.xlu0 %1315
        %1317 = vrot.lane.b32.xlu0 %v1312, 124
        %v1318 = vpop.permute.xlu0 %1317
        %v1321 = vadd.f32 %v1308, %v1316
        %v1322 = vadd.f32 %v1309, %v1318
        %v1323 = vstv %s266
        %v1324 = vmul.f32 %v1323, %v1264
        %v1325 = vmul.f32 %v1323, %v1265
        %1328 = vrot.lane.b32.xlu0 %v1324, 123
        %v1329 = vpop.permute.xlu0 %1328
        %1330 = vrot.lane.b32.xlu0 %v1325, 123
        %v1331 = vpop.permute.xlu0 %1330
        %v1334 = vadd.f32 %v1321, %v1329
        %v1335 = vadd.f32 %v1322, %v1331
        %v1336 = vstv %s267
        %v1337 = vmul.f32 %v1336, %v1264
        %v1338 = vmul.f32 %v1336, %v1265
        %1341 = vrot.lane.b32.xlu0 %v1337, 122
        %v1342 = vpop.permute.xlu0 %1341
        %1343 = vrot.lane.b32.xlu0 %v1338, 122
        %v1344 = vpop.permute.xlu0 %1343
        %v1347 = vadd.f32 %v1334, %v1342
        %v1348 = vadd.f32 %v1335, %v1344
        %v1349 = vld [vmem:[%s326 + $0x5] sm:$0xff]
        %v1350 = vld [vmem:[%s326 + $0xd] sm:$0xff]
        %v1351 = vstv %s268
        %v1352 = vmul.f32 %v1351, %v1349
        %v1353 = vmul.f32 %v1351, %v1350
        %v1354 = vadd.f32 %v1347, %v1352
        %v1355 = vadd.f32 %v1348, %v1353
        %v1356 = vstv %s269
        %v1357 = vmul.f32 %v1356, %v1349
        %v1358 = vmul.f32 %v1356, %v1350
        %1361 = vrot.lane.b32.xlu0 %v1357, 127
        %v1362 = vpop.permute.xlu0 %1361
        %1363 = vrot.lane.b32.xlu0 %v1358, 127
        %v1364 = vpop.permute.xlu0 %1363
        %v1367 = vadd.f32 %v1354, %v1362
        %v1368 = vadd.f32 %v1355, %v1364
        %v1369 = vstv %s270
        %v1370 = vmul.f32 %v1369, %v1349
        %v1371 = vmul.f32 %v1369, %v1350
        %1374 = vrot.lane.b32.xlu0 %v1370, 126
        %v1375 = vpop.permute.xlu0 %1374
        %1376 = vrot.lane.b32.xlu0 %v1371, 126
        %v1377 = vpop.permute.xlu0 %1376
        %v1380 = vadd.f32 %v1367, %v1375
        %v1381 = vadd.f32 %v1368, %v1377
        %v1382 = vstv %s271
        %v1383 = vmul.f32 %v1382, %v1349
        %v1384 = vmul.f32 %v1382, %v1350
        %1387 = vrot.lane.b32.xlu0 %v1383, 125
        %v1388 = vpop.permute.xlu0 %1387
        %1389 = vrot.lane.b32.xlu0 %v1384, 125
        %v1390 = vpop.permute.xlu0 %1389
        %v1393 = vadd.f32 %v1380, %v1388
        %v1394 = vadd.f32 %v1381, %v1390
        %v1395 = vstv %s272
        %v1396 = vmul.f32 %v1395, %v1349
        %v1397 = vmul.f32 %v1395, %v1350
        %1400 = vrot.lane.b32.xlu0 %v1396, 124
        %v1401 = vpop.permute.xlu0 %1400
        %1402 = vrot.lane.b32.xlu0 %v1397, 124
        %v1403 = vpop.permute.xlu0 %1402
        %v1406 = vadd.f32 %v1393, %v1401
        %v1407 = vadd.f32 %v1394, %v1403
        %v1408 = vstv %s273
        %v1409 = vmul.f32 %v1408, %v1349
        %v1410 = vmul.f32 %v1408, %v1350
        %1413 = vrot.lane.b32.xlu0 %v1409, 123
        %v1414 = vpop.permute.xlu0 %1413
        %1415 = vrot.lane.b32.xlu0 %v1410, 123
        %v1416 = vpop.permute.xlu0 %1415
        %v1419 = vadd.f32 %v1406, %v1414
        %v1420 = vadd.f32 %v1407, %v1416
        %v1421 = vstv %s274
        %v1422 = vmul.f32 %v1421, %v1349
        %v1423 = vmul.f32 %v1421, %v1350
        %1426 = vrot.lane.b32.xlu0 %v1422, 122
        %v1427 = vpop.permute.xlu0 %1426
        %1428 = vrot.lane.b32.xlu0 %v1423, 122
        %v1429 = vpop.permute.xlu0 %1428
        %v1432 = vadd.f32 %v1419, %v1427
        %v1433 = vadd.f32 %v1420, %v1429
        %v1434 = vld [vmem:[%s326 + $0x6] sm:$0xff]
        %v1435 = vld [vmem:[%s326 + $0xe] sm:$0xff]
        %v1436 = vstv %s275
        %v1437 = vmul.f32 %v1436, %v1434
        %v1438 = vmul.f32 %v1436, %v1435
        %v1439 = vadd.f32 %v1432, %v1437
        %v1440 = vadd.f32 %v1433, %v1438
        %v1441 = vstv %s276
        %v1442 = vmul.f32 %v1441, %v1434
        %v1443 = vmul.f32 %v1441, %v1435
        %1446 = vrot.lane.b32.xlu0 %v1442, 127
        %v1447 = vpop.permute.xlu0 %1446
        %1448 = vrot.lane.b32.xlu0 %v1443, 127
        %v1449 = vpop.permute.xlu0 %1448
        %v1452 = vadd.f32 %v1439, %v1447
        %v1453 = vadd.f32 %v1440, %v1449
        %v1454 = vstv %s277
        %v1455 = vmul.f32 %v1454, %v1434
        %v1456 = vmul.f32 %v1454, %v1435
        %1459 = vrot.lane.b32.xlu0 %v1455, 126
        %v1460 = vpop.permute.xlu0 %1459
        %1461 = vrot.lane.b32.xlu0 %v1456, 126
        %v1462 = vpop.permute.xlu0 %1461
        %v1465 = vadd.f32 %v1452, %v1460
        %v1466 = vadd.f32 %v1453, %v1462
        %v1467 = vstv %s278
        %v1468 = vmul.f32 %v1467, %v1434
        %v1469 = vmul.f32 %v1467, %v1435
        %1472 = vrot.lane.b32.xlu0 %v1468, 125
        %v1473 = vpop.permute.xlu0 %1472
        %1474 = vrot.lane.b32.xlu0 %v1469, 125
        %v1475 = vpop.permute.xlu0 %1474
        %v1478 = vadd.f32 %v1465, %v1473
        %v1479 = vadd.f32 %v1466, %v1475
        %v1480 = vstv %s279
        %v1481 = vmul.f32 %v1480, %v1434
        %v1482 = vmul.f32 %v1480, %v1435
        %1485 = vrot.lane.b32.xlu0 %v1481, 124
        %v1486 = vpop.permute.xlu0 %1485
        %1487 = vrot.lane.b32.xlu0 %v1482, 124
        %v1488 = vpop.permute.xlu0 %1487
        %v1491 = vadd.f32 %v1478, %v1486
        %v1492 = vadd.f32 %v1479, %v1488
        %v1493 = vstv %s280
        %v1494 = vmul.f32 %v1493, %v1434
        %v1495 = vmul.f32 %v1493, %v1435
        %1498 = vrot.lane.b32.xlu0 %v1494, 123
        %v1499 = vpop.permute.xlu0 %1498
        %1500 = vrot.lane.b32.xlu0 %v1495, 123
        %v1501 = vpop.permute.xlu0 %1500
        %v1504 = vadd.f32 %v1491, %v1499
        %v1505 = vadd.f32 %v1492, %v1501
        %v1506 = vstv %s281
        %v1507 = vmul.f32 %v1506, %v1434
        %v1508 = vmul.f32 %v1506, %v1435
        %1511 = vrot.lane.b32.xlu0 %v1507, 122
        %v1512 = vpop.permute.xlu0 %1511
        %1513 = vrot.lane.b32.xlu0 %v1508, 122
        %v1514 = vpop.permute.xlu0 %1513
        %v1517 = vadd.f32 %v1504, %v1512
        %v1518 = vadd.f32 %v1505, %v1514
        %v1519 = vxor.u32 %v1517, 2147483648
        %v1520 = vxor.u32 %v1518, 2147483648
        %v1521 = vmul.f32 %v1519, 1.442695
        %v1522 = vpow.pop %v1521
        %v1523 = vmul.f32 %v1520, 1.442695
        %v1524 = vpow.pop %v1523
        %v1525 = vadd.f32 %v1522, 1.0
        %v1526 = vadd.f32 %v1524, 1.0
        %v1527 = vrcp.pop %v1525
        %v1528 = vmul.f32 1.0, %v1527
        %v1529 = vrcp.pop %v1526
        %v1530 = vmul.f32 1.0, %v1529
        %vm1531 = vcmask 130048
        %1532 = vst.msk [vmem:[%s175] sm:$0xff] %vm1531, %v1528
        %1533 = vst.msk [vmem:[%s175 + $0x8] sm:$0xff] %vm1531, %v1530
        %s1534 = sand.u32 %s75, 1
        %s1535 = scalar_lea.sflag [#allocation5], %s1534
        %s1536 = sand.u32 %s75, 1
        %s1537 = smul.addr %s1536, 16
        %s1538 = scalar_lea.vmem [#allocation8], %s1537
        // Predicated region
        $region37: #{spatial_attention.1} parent=27 // pred_check
          %p1539 = pneg %p85
        $region38: #{spatial_attention.1} parent=27 // pred_check_branch
          %1541 = sbr.rel (%p1539) target = $region40
        $region39: #{spatial_attention.1} parent=27 // pred_region
          %s1543 = ssub.s32 256, 256
          %1544 = vsyncadd %s1535, %s1543
          %s1545 = smul.addr %s20, 2
          %s1546 = smul.addr %s1545, 128
          %s1547 = scalar_lea.hbm %s2, %s1546
          %s1548 = sshll.u32 %s1538, 4
          %s1549 = int_to_ptr.vmem [resolvable:$true] %s1548
          %1554 = dma.vmem_to_hbm [thread:$0]  %s1549, 256, %s1547, %s1535, 128, 128, 8
        $region40: #{spatial_attention.1} parent=27 // pred_fallthru
          _
      $region28: #{spatial_attention.1} parent=5 // pred_fallthru
        _
      %p1555 = scmp.le.s32.totalorder 2, %s15
      // Predicated region
      $region41: #{spatial_attention.1} parent=5 // pred_check
        %p1556 = pneg %p1555
      $region42: #{spatial_attention.1} parent=5 // pred_check_branch
        %1558 = sbr.rel (%p1556) target = $region44
      $region43: #{spatial_attention.1} parent=5 // pred_region
        %s1559 = ssub.s32 %s15, 2
        // Predicated region
        $region45: #{spatial_attention.1} parent=43 // pred_check
          %p1560 = pneg %p91
        $region46: #{spatial_attention.1} parent=43 // pred_check_branch
          %1562 = sbr.rel (%p1560) target = $region48
        $region47: #{spatial_attention.1} parent=43 // pred_region
          %s1563 = sand.u32 %s76, 1
          %s1564 = scalar_lea.sflag [#allocation5], %s1563
          %s1565 = sand.u32 %s76, 1
          %s1566 = smul.addr %s1565, 16
          %s1567 = scalar_lea.vmem [#allocation8], %s1566
          %1568 = dma.done %s1564, 256
        $region48: #{spatial_attention.1} parent=43 // pred_fallthru
          _
      $region44: #{spatial_attention.1} parent=5 // pred_fallthru
        _
    $region6: #{spatial_attention.1} parent=1 // loop_footer
      %s19 = sadd.s32 1, %s15
    $region7: #{spatial_attention.1} parent=1 // loop_footer_branch
      %14 = sbr.rel target = $region3
    $region8: #{spatial_attention.1} parent=1 // loop_exit
      _
    %1569 = vsyncpa [#allocation4], 1
    %s1570 = scalar_lea.sflag [#allocation4], 1
    %1571 = vsyncpa %s1570, 1
    %1572 = vsyncpa [#allocation5], 1
    %s1573 = scalar_lea.sflag [#allocation5], 1
    %1574 = vsyncpa %s1573, 1
    %1575 = vsyncpa [#allocation6], 1
    %s1576 = scalar_lea.sflag [#allocation6], 1
    %1577 = vsyncpa %s1576, 1

</llo_original>
